<compile_context>
chip_gen: v7x
topology: tpu7x:2x2x1
jax: 0.10.0
libtpu: 0.0.40
codegen_flags: <defaults>
</compile_context>

<pallas_src>
import functools

import jax
import jax.numpy as jnp
from jax import lax
from jax.experimental import pallas as pl
from jax.experimental.pallas import tpu as pltpu

EPS = 1e-5
LANES = 128


def _round_up(x, m):
    return (x + m - 1) // m * m


def _pick_band_rows(h, w):
    # Image rows per grid step.  Prefer ~8-16 rows so the per-step M-tile
    # (band_rows * W) is a decent MXU tile; keep it a multiple of 8 sublanes.
    for t in (8, 16, 4, 32, 2, 64, 1):
        if h % t == 0 and (t * w) % 8 == 0:
            return t
    return h


def _conv_block_kernel(xb_ref, w_ref, b_ref, g_ref, bt_ref, out_ref,
                       sum_acc, ssq_acc, scale_v, shift_v,
                       *, th, wd, cin, cout_p, m_total):
    """Two-phase fused ConvBlock.

    phase 0 (grid axis 0 == 0): conv+bias+ReLU per band, accumulate per-channel
      sum / sum^2; on the last band fold BN into scale/shift VMEM vectors.
    phase 1 (grid axis 0 == 1): recompute conv+bias+ReLU per band (Cin is small,
      so recompute is far cheaper than an HBM round-trip of the Cout_pad slab)
      and write out = relu * scale + shift.
    """
    phase = pl.program_id(0)
    band = pl.program_id(1)
    last_band = pl.num_programs(1) - 1

    @pl.when((phase == 0) & (band == 0))
    def _init():
        sum_acc[...] = jnp.zeros_like(sum_acc)
        ssq_acc[...] = jnp.zeros_like(ssq_acc)

    xb = xb_ref[...]                          # [th+2, wd+2, cin] bf16 halo band

    def tap(t):                               # shifted 3x3 tap -> [th*wd, cin]
        ky, kx = divmod(t, 3)
        return xb[ky:ky + th, kx:kx + wd, :].reshape(th * wd, cin)

    acc = jnp.dot(tap(0), w_ref[0], preferred_element_type=jnp.float32)
    for t in range(1, 9):
        acc = acc + jnp.dot(tap(t), w_ref[t],
                            preferred_element_type=jnp.float32)

    relu = jnp.maximum(acc + b_ref[...], 0.0)          # [th*wd, cout_p] f32

    @pl.when(phase == 0)
    def _stats():
        sum_acc[...] += jnp.sum(relu, axis=0, keepdims=True)
        ssq_acc[...] += jnp.sum(relu * relu, axis=0, keepdims=True)

    @pl.when((phase == 0) & (band == last_band))
    def _finalize():
        inv_m = 1.0 / float(m_total)
        mean = sum_acc[...] * inv_m
        var = jnp.maximum(ssq_acc[...] * inv_m - mean * mean, 0.0)  # biased var
        inv_std = lax.rsqrt(var + EPS)
        sc = g_ref[...] * inv_std
        scale_v[...] = sc
        shift_v[...] = bt_ref[...] - mean * sc

    @pl.when(phase == 1)
    def _write():
        out_ref[...] = relu * scale_v[...] + shift_v[...]


@jax.jit
def conv_block(x_nchw, w_oihw, bias, gamma, beta):
    """ConvBlock forward: Conv2d(3x3, s=1, p=1, bias) -> ReLU -> BatchNorm2d
    with training-mode (biased) batch statistics.  x_nchw: [N, Cin, H, W].
    """
    # TODO(synk): generalize to kernel_size/stride/pad other than the module
    # defaults (3, 1, 1); this kernel is specialized to the default ConvBlock.
    n, cin, h, wd = x_nchw.shape
    cout = w_oihw.shape[0]
    cout_p = _round_up(cout, LANES)        # lane-dense output channels

    th = _pick_band_rows(h, wd)            # image rows per grid step
    nb_h = h // th
    nb = n * nb_h                          # bands (grid axis 1)
    rows = th * wd                         # output pixels per band
    m = n * h * wd                         # total output pixels
    assert rows % 8 == 0, "band rows * W must be a multiple of 8"

    # ---------------- glue: pure data rearrangement, no arithmetic -----------
    # Padded NHWC input, split into row bands that each carry their own 1-row
    # halo (duplicates 2 rows per band instead of the 9x im2col expansion).
    x_nhwc = jnp.transpose(x_nchw, (0, 2, 3, 1))
    x_pad = jnp.pad(x_nhwc, ((0, 0), (1, 1), (1, 1), (0, 0)))
    bands = jnp.stack(
        [x_pad[:, i * th:i * th + th + 2] for i in range(nb_h)], axis=1)
    x_bands = bands.reshape(nb, th + 2, wd + 2, cin).astype(jnp.bfloat16)

    # Weights: OIHW -> [9, Cin, Cout_pad] (tap-major), bf16 for the MXU.
    w9 = jnp.transpose(w_oihw, (2, 3, 1, 0)).reshape(9, cin, cout)
    w9 = jnp.pad(w9, ((0, 0), (0, 0), (0, cout_p - cout))).astype(jnp.bfloat16)

    def pad_vec(v):
        return jnp.pad(v.astype(jnp.float32),
                       (0, cout_p - cout)).reshape(1, cout_p)

    b2, g2, bt2 = pad_vec(bias), pad_vec(gamma), pad_vec(beta)

    kernel = functools.partial(_conv_block_kernel, th=th, wd=wd, cin=cin,
                               cout_p=cout_p, m_total=m)
    bytes_accessed = (2 * x_bands.size * 2      # bands read twice (2 phases)
                      + w9.size * 2 + 3 * cout_p * 4
                      + m * cout_p * 4)          # output written once
    out2d = pl.pallas_call(
        kernel,
        out_shape=jax.ShapeDtypeStruct((m, cout_p), jnp.float32),
        grid=(2, nb),
        in_specs=[
            pl.BlockSpec((None, th + 2, wd + 2, cin),
                         lambda p, b: (b, 0, 0, 0)),
            pl.BlockSpec((9, cin, cout_p), lambda p, b: (0, 0, 0)),  # resident
            pl.BlockSpec((1, cout_p), lambda p, b: (0, 0)),
            pl.BlockSpec((1, cout_p), lambda p, b: (0, 0)),
            pl.BlockSpec((1, cout_p), lambda p, b: (0, 0)),
        ],
        # phase 0 -> constant block 0 (never written from the kernel, never
        # leaves VMEM early); phase 1 -> block b, written back exactly once.
        out_specs=pl.BlockSpec((rows, cout_p), lambda p, b: (p * b, 0)),
        scratch_shapes=[pltpu.VMEM((1, cout_p), jnp.float32),   # sum
                        pltpu.VMEM((1, cout_p), jnp.float32),   # sum of squares
                        pltpu.VMEM((1, cout_p), jnp.float32),   # BN scale
                        pltpu.VMEM((1, cout_p), jnp.float32)],  # BN shift
        compiler_params=pltpu.CompilerParams(
            dimension_semantics=("arbitrary", "arbitrary"),
            vmem_limit_bytes=64 * 1024 * 1024),
        cost_estimate=pl.CostEstimate(
            flops=2 * (2 * m * 9 * cin * cout_p),   # conv done in both phases
            transcendentals=cout_p,
            bytes_accessed=bytes_accessed),
    )(x_bands, w9, b2, g2, bt2)

    # Back to NCHW, dropping the channel padding.
    out = out2d[:, :cout].reshape(n, h, wd, cout)
    return jnp.transpose(out, (0, 3, 1, 2))


def reference(x, w, b, gamma, beta):
    """Plain-JAX reference of the PyTorch ConvBlock forward (training-mode BN)."""
    cout = w.shape[0]
    conv = lax.conv_general_dilated(
        x, w, window_strides=(1, 1), padding=((1, 1), (1, 1)),
        dimension_numbers=("NCHW", "OIHW", "NCHW"),
    ) + b.reshape(1, cout, 1, 1)
    relu = jnp.maximum(conv, 0.0)
    mean = jnp.mean(relu, axis=(0, 2, 3), keepdims=True)
    var = jnp.mean((relu - mean) ** 2, axis=(0, 2, 3), keepdims=True)  # biased
    return (relu - mean) / jnp.sqrt(var + EPS) * gamma.reshape(1, cout, 1, 1) \
        + beta.reshape(1, cout, 1, 1)


if __name__ == "__main__":
    N, CIN, COUT, H, W = 2, 4, 8, 16, 16

    key = jax.random.PRNGKey(0)
    kx, kw, kb = jax.random.split(key, 3)

    x = jax.random.normal(kx, (N, CIN, H, W), dtype=jnp.float32)
    # deterministic synthetic parameters (shapes from nn.Conv2d / nn.BatchNorm2d)
    w = jax.random.normal(kw, (COUT, CIN, 3, 3), dtype=jnp.float32) * 0.1
    b = jax.random.normal(kb, (COUT,), dtype=jnp.float32) * 0.1
    gamma = jnp.ones((COUT,), dtype=jnp.float32)   # BatchNorm2d default weight
    beta = jnp.zeros((COUT,), dtype=jnp.float32)   # BatchNorm2d default bias

    out = jax.block_until_ready(conv_block(x, w, b, gamma, beta))
    assert out.shape == (N, COUT, H, W)

    # Implementation check: reference with bf16-rounded conv operands (the MXU
    # consumes bf16 activations/weights); must agree to f32 accumulation noise.
    x_bf = x.astype(jnp.bfloat16).astype(jnp.float32)
    w_bf = w.astype(jnp.bfloat16).astype(jnp.float32)
    err_impl = float(jnp.max(jnp.abs(out - reference(x_bf, w_bf, b, gamma, beta))))
    assert err_impl < 5e-3, f"kernel math mismatch, max err={err_impl:e}"

    # Semantic check vs the full-f32 PyTorch-equivalent forward; tolerance is set
    # by bf16 rounding of the conv operands (outputs are unit-variance after BN).
    err = float(jnp.max(jnp.abs(out - reference(x, w, b, gamma, beta))))
    assert err < 5e-2, f"mismatch vs f32 reference, max err={err:e}"

    print("KERNEL_OK")
</pallas_src>

<mosaic_0001>
module attributes {stable_mosaic.version = 11 : i64} {
  func.func @_conv_block_kernel(%arg0: i32, %arg1: i32, %arg2: memref<1x10x18x4xbf16, #tpu.memory_space<vmem>>, %arg3: memref<9x4x128xbf16, #tpu.memory_space<vmem>>, %arg4: memref<1x128xf32, #tpu.memory_space<vmem>>, %arg5: memref<1x128xf32, #tpu.memory_space<vmem>>, %arg6: memref<1x128xf32, #tpu.memory_space<vmem>>, %arg7: memref<128x128xf32, #tpu.memory_space<vmem>>, %arg8: memref<1x128xf32, #tpu.memory_space<vmem>>, %arg9: memref<1x128xf32, #tpu.memory_space<vmem>>, %arg10: memref<1x128xf32, #tpu.memory_space<vmem>>, %arg11: memref<1x128xf32, #tpu.memory_space<vmem>>) attributes {dimension_semantics = [#tpu.dimension_semantics<arbitrary>, #tpu.dimension_semantics<arbitrary>], iteration_bounds = array<i64: 2, 4>, scalar_prefetch = 0 : i64, scratch_operands = 4 : i64, tpu.core_type = #tpu.core_type<tc>, window_params = [{transform_indices = @transform_0, window_bounds = array<i64: 1, 10, 18, 4>}, {pipeline_mode = #tpu.pipeline_mode<synchronous>, transform_indices = @transform_1, window_bounds = array<i64: 9, 4, 128>}, {pipeline_mode = #tpu.pipeline_mode<synchronous>, transform_indices = @transform_2, window_bounds = array<i64: 1, 128>}, {pipeline_mode = #tpu.pipeline_mode<synchronous>, transform_indices = @transform_3, window_bounds = array<i64: 1, 128>}, {pipeline_mode = #tpu.pipeline_mode<synchronous>, transform_indices = @transform_4, window_bounds = array<i64: 1, 128>}, {transform_indices = @transform_5, window_bounds = array<i64: 128, 128>}]} {
    %c0_i32 = arith.constant 0 : i32
    %0 = arith.cmpi eq, %arg0, %c0_i32 : i32
    %c0_i32_0 = arith.constant 0 : i32
    %1 = arith.cmpi eq, %arg1, %c0_i32_0 : i32
    %2 = arith.andi %0, %1 : i1
    %3 = arith.extui %2 : i1 to i32
    %c0_i32_1 = arith.constant 0 : i32
    %4 = arith.cmpi ne, %3, %c0_i32_1 : i32
    scf.if %4 {
      %cst_40 = arith.constant 0.000000e+00 : f32
      %76 = vector.broadcast %cst_40 : f32 to vector<1x128xf32>
      %c0_41 = arith.constant 0 : index
      %c0_42 = arith.constant 0 : index
      %77 = vector.load %arg8[%c0_41, %c0_42] : memref<1x128xf32, #tpu.memory_space<vmem>>, vector<1x128xf32>
      tpu.vector_store %arg8[%c0_41, %c0_42], %76 {strides = array<i32>} : memref<1x128xf32, #tpu.memory_space<vmem>>, vector<1x128xf32>,
      %cst_43 = arith.constant 0.000000e+00 : f32
      %78 = vector.broadcast %cst_43 : f32 to vector<1x128xf32>
      %c0_44 = arith.constant 0 : index
      %c0_45 = arith.constant 0 : index
      %79 = vector.load %arg9[%c0_44, %c0_45] : memref<1x128xf32, #tpu.memory_space<vmem>>, vector<1x128xf32>
      tpu.vector_store %arg9[%c0_44, %c0_45], %78 {strides = array<i32>} : memref<1x128xf32, #tpu.memory_space<vmem>>, vector<1x128xf32>,
    } else {
    }
    %c0 = arith.constant 0 : index
    %c0_2 = arith.constant 0 : index
    %c0_3 = arith.constant 0 : index
    %c0_4 = arith.constant 0 : index
    %5 = vector.load %arg2[%c0, %c0_2, %c0_3, %c0_4] : memref<1x10x18x4xbf16, #tpu.memory_space<vmem>>, vector<1x10x18x4xbf16>
    %6 = vector.shape_cast %5 : vector<1x10x18x4xbf16> to vector<10x18x4xbf16>
    %7 = vector.extract_strided_slice %6 {offsets = [0, 0, 0], sizes = [8, 16, 4], strides = [1, 1, 1]} : vector<10x18x4xbf16> to vector<8x16x4xbf16>
    %8 = vector.shape_cast %7 : vector<8x16x4xbf16> to vector<128x4xbf16>
    %c0_5 = arith.constant 0 : index
    %c0_6 = arith.constant 0 : index
    %c0_7 = arith.constant 0 : index
    %9 = vector.load %arg3[%c0_5, %c0_6, %c0_7] : memref<9x4x128xbf16, #tpu.memory_space<vmem>>, vector<1x4x128xbf16>
    %10 = vector.shape_cast %9 : vector<1x4x128xbf16> to vector<4x128xbf16>
    %cst = arith.constant dense<0.000000e+00> : vector<128x128xf32>
    %11 = tpu.matmul %8, %10, %cst {dimension_numbers = #tpu.dot_dimension_numbers<[1], [0], [0], [1], [0, 0, 1, 1], [], []>} : vector<128x4xbf16>, vector<4x128xbf16>, vector<128x128xf32> -> vector<128x128xf32>
    %12 = vector.extract_strided_slice %6 {offsets = [0, 1, 0], sizes = [8, 16, 4], strides = [1, 1, 1]} : vector<10x18x4xbf16> to vector<8x16x4xbf16>
    %13 = vector.shape_cast %12 : vector<8x16x4xbf16> to vector<128x4xbf16>
    %c1 = arith.constant 1 : index
    %c0_8 = arith.constant 0 : index
    %c0_9 = arith.constant 0 : index
    %14 = vector.load %arg3[%c1, %c0_8, %c0_9] : memref<9x4x128xbf16, #tpu.memory_space<vmem>>, vector<1x4x128xbf16>
    %15 = vector.shape_cast %14 : vector<1x4x128xbf16> to vector<4x128xbf16>
    %cst_10 = arith.constant dense<0.000000e+00> : vector<128x128xf32>
    %16 = tpu.matmul %13, %15, %cst_10 {dimension_numbers = #tpu.dot_dimension_numbers<[1], [0], [0], [1], [0, 0, 1, 1], [], []>} : vector<128x4xbf16>, vector<4x128xbf16>, vector<128x128xf32> -> vector<128x128xf32>
    %17 = arith.addf %11, %16 : vector<128x128xf32>
    %18 = vector.extract_strided_slice %6 {offsets = [0, 2, 0], sizes = [8, 16, 4], strides = [1, 1, 1]} : vector<10x18x4xbf16> to vector<8x16x4xbf16>
    %19 = vector.shape_cast %18 : vector<8x16x4xbf16> to vector<128x4xbf16>
    %c2 = arith.constant 2 : index
    %c0_11 = arith.constant 0 : index
    %c0_12 = arith.constant 0 : index
    %20 = vector.load %arg3[%c2, %c0_11, %c0_12] : memref<9x4x128xbf16, #tpu.memory_space<vmem>>, vector<1x4x128xbf16>
    %21 = vector.shape_cast %20 : vector<1x4x128xbf16> to vector<4x128xbf16>
    %cst_13 = arith.constant dense<0.000000e+00> : vector<128x128xf32>
    %22 = tpu.matmul %19, %21, %cst_13 {dimension_numbers = #tpu.dot_dimension_numbers<[1], [0], [0], [1], [0, 0, 1, 1], [], []>} : vector<128x4xbf16>, vector<4x128xbf16>, vector<128x128xf32> -> vector<128x128xf32>
    %23 = arith.addf %17, %22 : vector<128x128xf32>
    %24 = vector.extract_strided_slice %6 {offsets = [1, 0, 0], sizes = [8, 16, 4], strides = [1, 1, 1]} : vector<10x18x4xbf16> to vector<8x16x4xbf16>
    %25 = vector.shape_cast %24 : vector<8x16x4xbf16> to vector<128x4xbf16>
    %c3 = arith.constant 3 : index
    %c0_14 = arith.constant 0 : index
    %c0_15 = arith.constant 0 : index
    %26 = vector.load %arg3[%c3, %c0_14, %c0_15] : memref<9x4x128xbf16, #tpu.memory_space<vmem>>, vector<1x4x128xbf16>
    %27 = vector.shape_cast %26 : vector<1x4x128xbf16> to vector<4x128xbf16>
    %cst_16 = arith.constant dense<0.000000e+00> : vector<128x128xf32>
    %28 = tpu.matmul %25, %27, %cst_16 {dimension_numbers = #tpu.dot_dimension_numbers<[1], [0], [0], [1], [0, 0, 1, 1], [], []>} : vector<128x4xbf16>, vector<4x128xbf16>, vector<128x128xf32> -> vector<128x128xf32>
    %29 = arith.addf %23, %28 : vector<128x128xf32>
    %30 = vector.extract_strided_slice %6 {offsets = [1, 1, 0], sizes = [8, 16, 4], strides = [1, 1, 1]} : vector<10x18x4xbf16> to vector<8x16x4xbf16>
    %31 = vector.shape_cast %30 : vector<8x16x4xbf16> to vector<128x4xbf16>
    %c4 = arith.constant 4 : index
    %c0_17 = arith.constant 0 : index
    %c0_18 = arith.constant 0 : index
    %32 = vector.load %arg3[%c4, %c0_17, %c0_18] : memref<9x4x128xbf16, #tpu.memory_space<vmem>>, vector<1x4x128xbf16>
    %33 = vector.shape_cast %32 : vector<1x4x128xbf16> to vector<4x128xbf16>
    %cst_19 = arith.constant dense<0.000000e+00> : vector<128x128xf32>
    %34 = tpu.matmul %31, %33, %cst_19 {dimension_numbers = #tpu.dot_dimension_numbers<[1], [0], [0], [1], [0, 0, 1, 1], [], []>} : vector<128x4xbf16>, vector<4x128xbf16>, vector<128x128xf32> -> vector<128x128xf32>
    %35 = arith.addf %29, %34 : vector<128x128xf32>
    %36 = vector.extract_strided_slice %6 {offsets = [1, 2, 0], sizes = [8, 16, 4], strides = [1, 1, 1]} : vector<10x18x4xbf16> to vector<8x16x4xbf16>
    %37 = vector.shape_cast %36 : vector<8x16x4xbf16> to vector<128x4xbf16>
    %c5 = arith.constant 5 : index
    %c0_20 = arith.constant 0 : index
    %c0_21 = arith.constant 0 : index
    %38 = vector.load %arg3[%c5, %c0_20, %c0_21] : memref<9x4x128xbf16, #tpu.memory_space<vmem>>, vector<1x4x128xbf16>
    %39 = vector.shape_cast %38 : vector<1x4x128xbf16> to vector<4x128xbf16>
    %cst_22 = arith.constant dense<0.000000e+00> : vector<128x128xf32>
    %40 = tpu.matmul %37, %39, %cst_22 {dimension_numbers = #tpu.dot_dimension_numbers<[1], [0], [0], [1], [0, 0, 1, 1], [], []>} : vector<128x4xbf16>, vector<4x128xbf16>, vector<128x128xf32> -> vector<128x128xf32>
    %41 = arith.addf %35, %40 : vector<128x128xf32>
    %42 = vector.extract_strided_slice %6 {offsets = [2, 0, 0], sizes = [8, 16, 4], strides = [1, 1, 1]} : vector<10x18x4xbf16> to vector<8x16x4xbf16>
    %43 = vector.shape_cast %42 : vector<8x16x4xbf16> to vector<128x4xbf16>
    %c6 = arith.constant 6 : index
    %c0_23 = arith.constant 0 : index
    %c0_24 = arith.constant 0 : index
    %44 = vector.load %arg3[%c6, %c0_23, %c0_24] : memref<9x4x128xbf16, #tpu.memory_space<vmem>>, vector<1x4x128xbf16>
    %45 = vector.shape_cast %44 : vector<1x4x128xbf16> to vector<4x128xbf16>
    %cst_25 = arith.constant dense<0.000000e+00> : vector<128x128xf32>
    %46 = tpu.matmul %43, %45, %cst_25 {dimension_numbers = #tpu.dot_dimension_numbers<[1], [0], [0], [1], [0, 0, 1, 1], [], []>} : vector<128x4xbf16>, vector<4x128xbf16>, vector<128x128xf32> -> vector<128x128xf32>
    %47 = arith.addf %41, %46 : vector<128x128xf32>
    %48 = vector.extract_strided_slice %6 {offsets = [2, 1, 0], sizes = [8, 16, 4], strides = [1, 1, 1]} : vector<10x18x4xbf16> to vector<8x16x4xbf16>
    %49 = vector.shape_cast %48 : vector<8x16x4xbf16> to vector<128x4xbf16>
    %c7 = arith.constant 7 : index
    %c0_26 = arith.constant 0 : index
    %c0_27 = arith.constant 0 : index
    %50 = vector.load %arg3[%c7, %c0_26, %c0_27] : memref<9x4x128xbf16, #tpu.memory_space<vmem>>, vector<1x4x128xbf16>
    %51 = vector.shape_cast %50 : vector<1x4x128xbf16> to vector<4x128xbf16>
    %cst_28 = arith.constant dense<0.000000e+00> : vector<128x128xf32>
    %52 = tpu.matmul %49, %51, %cst_28 {dimension_numbers = #tpu.dot_dimension_numbers<[1], [0], [0], [1], [0, 0, 1, 1], [], []>} : vector<128x4xbf16>, vector<4x128xbf16>, vector<128x128xf32> -> vector<128x128xf32>
    %53 = arith.addf %47, %52 : vector<128x128xf32>
    %54 = vector.extract_strided_slice %6 {offsets = [2, 2, 0], sizes = [8, 16, 4], strides = [1, 1, 1]} : vector<10x18x4xbf16> to vector<8x16x4xbf16>
    %55 = vector.shape_cast %54 : vector<8x16x4xbf16> to vector<128x4xbf16>
    %c8 = arith.constant 8 : index
    %c0_29 = arith.constant 0 : index
    %c0_30 = arith.constant 0 : index
    %56 = vector.load %arg3[%c8, %c0_29, %c0_30] : memref<9x4x128xbf16, #tpu.memory_space<vmem>>, vector<1x4x128xbf16>
    %57 = vector.shape_cast %56 : vector<1x4x128xbf16> to vector<4x128xbf16>
    %cst_31 = arith.constant dense<0.000000e+00> : vector<128x128xf32>
    %58 = tpu.matmul %55, %57, %cst_31 {dimension_numbers = #tpu.dot_dimension_numbers<[1], [0], [0], [1], [0, 0, 1, 1], [], []>} : vector<128x4xbf16>, vector<4x128xbf16>, vector<128x128xf32> -> vector<128x128xf32>
    %59 = arith.addf %53, %58 : vector<128x128xf32>
    %c0_32 = arith.constant 0 : index
    %c0_33 = arith.constant 0 : index
    %60 = vector.load %arg4[%c0_32, %c0_33] : memref<1x128xf32, #tpu.memory_space<vmem>>, vector<1x128xf32>
    %61 = vector.broadcast %60 : vector<1x128xf32> to vector<128x128xf32>
    %62 = arith.addf %59, %61 : vector<128x128xf32>
    %cst_34 = arith.constant 0.000000e+00 : f32
    %63 = vector.broadcast %cst_34 : f32 to vector<128x128xf32>
    %64 = arith.maximumf %62, %63 : vector<128x128xf32>
    %c0_i32_35 = arith.constant 0 : i32
    %65 = arith.cmpi eq, %arg0, %c0_i32_35 : i32
    %66 = arith.extui %65 : i1 to i32
    %c0_i32_36 = arith.constant 0 : i32
    %67 = arith.cmpi ne, %66, %c0_i32_36 : i32
    scf.if %67 {
      %c0_40 = arith.constant 0 : index
      %c0_41 = arith.constant 0 : index
      %76 = vector.load %arg8[%c0_40, %c0_41] : memref<1x128xf32, #tpu.memory_space<vmem>>, vector<1x128xf32>
      %cst_42 = arith.constant dense<0.000000e+00> : vector<128xf32>
      %77 = vector.multi_reduction <add>, %64, %cst_42 [0] : vector<128x128xf32> to vector<128xf32>
      %78 = vector.shape_cast %77 : vector<128xf32> to vector<1x128xf32>
      %79 = arith.addf %76, %78 : vector<1x128xf32>
      %c0_43 = arith.constant 0 : index
      %c0_44 = arith.constant 0 : index
      %80 = vector.load %arg8[%c0_43, %c0_44] : memref<1x128xf32, #tpu.memory_space<vmem>>, vector<1x128xf32>
      tpu.vector_store %arg8[%c0_43, %c0_44], %79 {strides = array<i32>} : memref<1x128xf32, #tpu.memory_space<vmem>>, vector<1x128xf32>,
      %c0_45 = arith.constant 0 : index
      %c0_46 = arith.constant 0 : index
      %81 = vector.load %arg9[%c0_45, %c0_46] : memref<1x128xf32, #tpu.memory_space<vmem>>, vector<1x128xf32>
      %82 = arith.mulf %64, %64 : vector<128x128xf32>
      %cst_47 = arith.constant dense<0.000000e+00> : vector<128xf32>
      %83 = vector.multi_reduction <add>, %82, %cst_47 [0] : vector<128x128xf32> to vector<128xf32>
      %84 = vector.shape_cast %83 : vector<128xf32> to vector<1x128xf32>
      %85 = arith.addf %81, %84 : vector<1x128xf32>
      %c0_48 = arith.constant 0 : index
      %c0_49 = arith.constant 0 : index
      %86 = vector.load %arg9[%c0_48, %c0_49] : memref<1x128xf32, #tpu.memory_space<vmem>>, vector<1x128xf32>
      tpu.vector_store %arg9[%c0_48, %c0_49], %85 {strides = array<i32>} : memref<1x128xf32, #tpu.memory_space<vmem>>, vector<1x128xf32>,
    } else {
    }
    %c0_i32_37 = arith.constant 0 : i32
    %68 = arith.cmpi eq, %arg0, %c0_i32_37 : i32
    %c3_i32 = arith.constant 3 : i32
    %69 = arith.cmpi eq, %arg1, %c3_i32 : i32
    %70 = arith.andi %68, %69 : i1
    %71 = arith.extui %70 : i1 to i32
    %c0_i32_38 = arith.constant 0 : i32
    %72 = arith.cmpi ne, %71, %c0_i32_38 : i32
    scf.if %72 {
      %c0_40 = arith.constant 0 : index
      %c0_41 = arith.constant 0 : index
      %76 = vector.load %arg8[%c0_40, %c0_41] : memref<1x128xf32, #tpu.memory_space<vmem>>, vector<1x128xf32>
      %cst_42 = arith.constant 0.001953125 : f32
      %77 = vector.broadcast %cst_42 : f32 to vector<1x128xf32>
      %78 = arith.mulf %76, %77 : vector<1x128xf32>
      %c0_43 = arith.constant 0 : index
      %c0_44 = arith.constant 0 : index
      %79 = vector.load %arg9[%c0_43, %c0_44] : memref<1x128xf32, #tpu.memory_space<vmem>>, vector<1x128xf32>
      %cst_45 = arith.constant 0.001953125 : f32
      %80 = vector.broadcast %cst_45 : f32 to vector<1x128xf32>
      %81 = arith.mulf %79, %80 : vector<1x128xf32>
      %82 = arith.mulf %78, %78 : vector<1x128xf32>
      %83 = arith.subf %81, %82 : vector<1x128xf32>
      %cst_46 = arith.constant 0.000000e+00 : f32
      %84 = vector.broadcast %cst_46 : f32 to vector<1x128xf32>
      %85 = arith.maximumf %83, %84 : vector<1x128xf32>
      %cst_47 = arith.constant 9.99999974E-6 : f32
      %86 = vector.broadcast %cst_47 : f32 to vector<1x128xf32>
      %87 = arith.addf %85, %86 : vector<1x128xf32>
      %88 = math.rsqrt %87 : vector<1x128xf32>
      %c0_48 = arith.constant 0 : index
      %c0_49 = arith.constant 0 : index
      %89 = vector.load %arg5[%c0_48, %c0_49] : memref<1x128xf32, #tpu.memory_space<vmem>>, vector<1x128xf32>
      %90 = arith.mulf %89, %88 : vector<1x128xf32>
      %c0_50 = arith.constant 0 : index
      %c0_51 = arith.constant 0 : index
      %91 = vector.load %arg10[%c0_50, %c0_51] : memref<1x128xf32, #tpu.memory_space<vmem>>, vector<1x128xf32>
      tpu.vector_store %arg10[%c0_50, %c0_51], %90 {strides = array<i32>} : memref<1x128xf32, #tpu.memory_space<vmem>>, vector<1x128xf32>,
      %c0_52 = arith.constant 0 : index
      %c0_53 = arith.constant 0 : index
      %92 = vector.load %arg6[%c0_52, %c0_53] : memref<1x128xf32, #tpu.memory_space<vmem>>, vector<1x128xf32>
      %93 = arith.mulf %78, %90 : vector<1x128xf32>
      %94 = arith.subf %92, %93 : vector<1x128xf32>
      %c0_54 = arith.constant 0 : index
      %c0_55 = arith.constant 0 : index
      %95 = vector.load %arg11[%c0_54, %c0_55] : memref<1x128xf32, #tpu.memory_space<vmem>>, vector<1x128xf32>
      tpu.vector_store %arg11[%c0_54, %c0_55], %94 {strides = array<i32>} : memref<1x128xf32, #tpu.memory_space<vmem>>, vector<1x128xf32>,
    } else {
    }
    %c1_i32 = arith.constant 1 : i32
    %73 = arith.cmpi eq, %arg0, %c1_i32 : i32
    %74 = arith.extui %73 : i1 to i32
    %c0_i32_39 = arith.constant 0 : i32
    %75 = arith.cmpi ne, %74, %c0_i32_39 : i32
    scf.if %75 {
      %c0_40 = arith.constant 0 : index
      %c0_41 = arith.constant 0 : index
      %76 = vector.load %arg10[%c0_40, %c0_41] : memref<1x128xf32, #tpu.memory_space<vmem>>, vector<1x128xf32>
      %77 = vector.broadcast %76 : vector<1x128xf32> to vector<128x128xf32>
      %78 = arith.mulf %64, %77 : vector<128x128xf32>
      %c0_42 = arith.constant 0 : index
      %c0_43 = arith.constant 0 : index
      %79 = vector.load %arg11[%c0_42, %c0_43] : memref<1x128xf32, #tpu.memory_space<vmem>>, vector<1x128xf32>
      %80 = vector.broadcast %79 : vector<1x128xf32> to vector<128x128xf32>
      %81 = arith.addf %78, %80 : vector<128x128xf32>
      %c0_44 = arith.constant 0 : index
      %c0_45 = arith.constant 0 : index
      %82 = vector.load %arg7[%c0_44, %c0_45] : memref<128x128xf32, #tpu.memory_space<vmem>>, vector<128x128xf32>
      tpu.vector_store %arg7[%c0_44, %c0_45], %81 {strides = array<i32>} : memref<128x128xf32, #tpu.memory_space<vmem>>, vector<128x128xf32>,
    } else {
    }
    return
  }
  func.func @transform_0(%arg0: i32, %arg1: i32) -> (i32, i32, i32, i32) {
    %c0_i32 = arith.constant 0 : i32
    %c0_i32_0 = arith.constant 0 : i32
    %c0_i32_1 = arith.constant 0 : i32
    %c0_i32_2 = arith.constant 0 : i32
    return %arg1, %c0_i32, %c0_i32_0, %c0_i32_1 : i32, i32, i32, i32
  }
  func.func @transform_1(%arg0: i32, %arg1: i32) -> (i32, i32, i32) {
    %c0_i32 = arith.constant 0 : i32
    %c0_i32_0 = arith.constant 0 : i32
    %c0_i32_1 = arith.constant 0 : i32
    %c0_i32_2 = arith.constant 0 : i32
    return %c0_i32, %c0_i32_0, %c0_i32_1 : i32, i32, i32
  }
  func.func @transform_2(%arg0: i32, %arg1: i32) -> (i32, i32) {
    %c0_i32 = arith.constant 0 : i32
    %c0_i32_0 = arith.constant 0 : i32
    %c0_i32_1 = arith.constant 0 : i32
    return %c0_i32, %c0_i32_0 : i32, i32
  }
  func.func @transform_3(%arg0: i32, %arg1: i32) -> (i32, i32) {
    %c0_i32 = arith.constant 0 : i32
    %c0_i32_0 = arith.constant 0 : i32
    %c0_i32_1 = arith.constant 0 : i32
    return %c0_i32, %c0_i32_0 : i32, i32
  }
  func.func @transform_4(%arg0: i32, %arg1: i32) -> (i32, i32) {
    %c0_i32 = arith.constant 0 : i32
    %c0_i32_0 = arith.constant 0 : i32
    %c0_i32_1 = arith.constant 0 : i32
    return %c0_i32, %c0_i32_0 : i32, i32
  }
  func.func @transform_5(%arg0: i32, %arg1: i32) -> (i32, i32) {
    %0 = arith.muli %arg0, %arg1 : i32
    %c0_i32 = arith.constant 0 : i32
    %c0_i32_0 = arith.constant 0 : i32
    return %0, %c0_i32 : i32, i32
  }
}

</mosaic_0001>

<llo_original>
// kernel: conv_block.1
$region0: #{conv_block.1}
  #allocation0 [shape = 'u32[]', space=smem, size = 0x4, offset = 0x4, fixed_abs, tag = 'smem constant byte address 0x4 - core index']
  #allocation1 [shape = 'u32[144,128]{1,0:T(1,128)}', space=vmem, size = 0x12000, scoped, tag = 'internal scratch']
  #allocation2 [shape = 'f32[1,128]{1,0:T(1,128)}', space=vmem, size = 0x200, scoped, tag = 'scratch operand']
  #allocation3 [shape = 'f32[1,128]{1,0:T(1,128)}', space=vmem, size = 0x200, scoped, tag = 'scratch operand']
  #allocation4 [shape = 'f32[1,128]{1,0:T(1,128)}', space=vmem, size = 0x200, scoped, tag = 'scratch operand']
  #allocation5 [shape = 'f32[1,128]{1,0:T(1,128)}', space=vmem, size = 0x200, scoped, tag = 'scratch operand']
  %s0 = inlined_call_operand.hbm [shape: bf16[4,10,18,4], index: 0, kind: input, shape index: {}]
  %s1 = inlined_call_operand.hbm [shape: bf16[9,4,128], index: 1, kind: input, shape index: {}]
  %s2 = inlined_call_operand.hbm [shape: f32[1,128], index: 2, kind: input, shape index: {}]
  %s3 = inlined_call_operand.hbm [shape: f32[1,128], index: 3, kind: input, shape index: {}]
  %s4 = inlined_call_operand.hbm [shape: f32[1,128], index: 4, kind: input, shape index: {}]
  %s5 = inlined_call_operand.hbm [shape: f32[512,128], index: 5, kind: output, shape index: {}]
  %s6 = sld [smem:[#allocation0]]
  $region89: #{conv_block.1} parent=0
    _
  %s8 = ssub.s32 1, %s6
  %s9 = scalar_select 0, %s8, %s6
  $region1: #{conv_block.1} parent=0
    #allocation6 [shape = 'u8[122880]{0}', space=vmem, size = 0x1e000, scoped, tag = 'input window, operand 0']
    #allocation7 [shape = 's32[2]{0}', space=sflag, size = 0x8, scoped, tag = 'scoped memory for conv_block.1']
    #allocation8 [shape = 's32[2]{0}', space=sflag, size = 0x8, scoped, tag = 'scoped memory for conv_block.1']
    #allocation9 [shape = 'u8[9216]{0}', space=vmem, size = 0x2400, scoped, tag = 'input window, operand 1, single buffered']
    #allocation10 [shape = 's32[1]{0}', space=sflag, size = 0x4, scoped, tag = 'scoped memory for conv_block.1']
    #allocation11 [shape = 'u8[512]{0}', space=vmem, size = 0x400, scoped, tag = 'input window, operand 2, single buffered']
    #allocation12 [shape = 'u8[512]{0}', space=vmem, size = 0x400, scoped, tag = 'input window, operand 3, single buffered']
    #allocation13 [shape = 's32[1]{0}', space=sflag, size = 0x4, scoped, tag = 'scoped memory for conv_block.1']
    #allocation14 [shape = 'u8[512]{0}', space=vmem, size = 0x400, scoped, tag = 'input window, operand 4, single buffered']
    #allocation15 [shape = 'u8[131072]{0}', space=vmem, size = 0x20000, scoped, tag = 'output window, operand 0']
    %10 = vsyncpa [#allocation7], 0
    %s11 = scalar_lea.sflag [#allocation7], 1
    %12 = vsyncpa %s11, 0
    %13 = vsyncpa [#allocation10], 0
    %14 = vsyncpa [#allocation13], 0
    %15 = vsyncpa [#allocation8], 0
    %s16 = scalar_lea.sflag [#allocation8], 1
    %17 = vsyncpa %s16, 0
    loop: start=0, step=1, limit=10
    $region2: #{conv_block.1} parent=1 // loop_pre_header
      _
    $region3: #{conv_block.1} parent=1 // loop_header
      %s19 = sphi 0, %s23
      %p20 = scmp.ge.s32.totalorder %s19, 10
      %s26 = sphi 0, %s38
      %s27 = sphi 0, %s34
      %s28 = sphi 0, %s26
      %s29 = sphi 0, %s27
      %s30 = sphi 0, %s28
      %s31 = sphi 0, %s29
      %s41 = sphi 0, %s43
      %s44 = sphi 0, %s41
      %s45 = sphi 0, %s44
      %s61 = sphi 0, %s45
      %s65 = sphi 0, %s65
      %s67 = sphi 0, %s65
      %s68 = sphi 0, %s67
      %s82 = sphi 0, %s68
      %s86 = sphi 0, %s86
      %s88 = sphi 0, %s86
      %s89 = sphi 0, %s88
      %s103 = sphi 0, %s89
      %s107 = sphi 0, %s107
      %s109 = sphi 0, %s107
      %s110 = sphi 0, %s109
      %s124 = sphi 0, %s110
      %s128 = sphi 0, %s128
      %s130 = sphi 0, %s128
      %s131 = sphi 0, %s130
      %s145 = sphi 0, %s131
      %s153 = sphi 0, %s155
      %s156 = sphi 0, %s153
      %s157 = sphi 0, %s156
      %s173 = sphi 0, %s157
    $region4: #{conv_block.1} parent=1 // loop_header_branch
      %22 = sbr.rel (%p20) target = $region8
    $region5: #{conv_block.1} parent=1 // loop_body
      %s24 = ssub.s32 %s19, 1
      %s25 = ssub.s32 %s19, 2
      %s32 = sadd.s32 1, %s27
      %p33 = scmp.ge.s32.totalorder %s32, 4
      %s34 = scalar_select %p33, 0, %s32
      %s35 = sadd.s32 1, %s26
      %s36 = scalar_select %p33, %s35, %s26
      %p37 = scmp.ge.s32.totalorder %s36, 2
      %s38 = scalar_select %p37, 0, %s36
      %s39 = ssub.s32 %s27, %s34
      %p40 = scmp.eq.s32.totalorder %s39, 0
      %s42 = sadd.s32 %s41, 1
      %s43 = scalar_select %p40, %s41, %s42
      %p46 = pneg %p40
      %p47 = scmp.eq.s32.totalorder %s19, 7
      %p48 = por %p46, %p47
      %p49 = scmp.ne.s32.totalorder %s41, %s44
      %p50 = scmp.eq.s32.totalorder %s19, 0
      %p51 = por %p49, %p50
      %p52 = scmp.ne.s32.totalorder %s41, %s44
      %p53 = scmp.eq.s32.totalorder %s24, 7
      %p54 = por %p52, %p53
      %p55 = scmp.ne.s32.totalorder %s44, %s45
      %p56 = scmp.eq.s32.totalorder %s24, 0
      %p57 = por %p55, %p56
      %p58 = scmp.ne.s32.totalorder %s44, %s45
      %p59 = scmp.eq.s32.totalorder %s25, 7
      %p60 = por %p58, %p59
      %p62 = scmp.ne.s32.totalorder %s45, %s61
      %p63 = scmp.eq.s32.totalorder %s25, 0
      %p64 = por %p62, %p63
      %s66 = sadd.s32 %s65, 1
      %p69 = scmp.eq.s32.totalorder %s19, 7
      %p70 = scmp.ne.s32.totalorder %s65, %s67
      %p71 = scmp.eq.s32.totalorder %s19, 0
      %p72 = por %p70, %p71
      %p73 = scmp.ne.s32.totalorder %s65, %s67
      %p74 = scmp.eq.s32.totalorder %s24, 7
      %p75 = por %p73, %p74
      %p76 = scmp.ne.s32.totalorder %s67, %s68
      %p77 = scmp.eq.s32.totalorder %s24, 0
      %p78 = por %p76, %p77
      %p79 = scmp.ne.s32.totalorder %s67, %s68
      %p80 = scmp.eq.s32.totalorder %s25, 7
      %p81 = por %p79, %p80
      %p83 = scmp.ne.s32.totalorder %s68, %s82
      %p84 = scmp.eq.s32.totalorder %s25, 0
      %p85 = por %p83, %p84
      %s87 = sadd.s32 %s86, 1
      %p90 = scmp.eq.s32.totalorder %s19, 7
      %p91 = scmp.ne.s32.totalorder %s86, %s88
      %p92 = scmp.eq.s32.totalorder %s19, 0
      %p93 = por %p91, %p92
      %p94 = scmp.ne.s32.totalorder %s86, %s88
      %p95 = scmp.eq.s32.totalorder %s24, 7
      %p96 = por %p94, %p95
      %p97 = scmp.ne.s32.totalorder %s88, %s89
      %p98 = scmp.eq.s32.totalorder %s24, 0
      %p99 = por %p97, %p98
      %p100 = scmp.ne.s32.totalorder %s88, %s89
      %p101 = scmp.eq.s32.totalorder %s25, 7
      %p102 = por %p100, %p101
      %p104 = scmp.ne.s32.totalorder %s89, %s103
      %p105 = scmp.eq.s32.totalorder %s25, 0
      %p106 = por %p104, %p105
      %s108 = sadd.s32 %s107, 1
      %p111 = scmp.eq.s32.totalorder %s19, 7
      %p112 = scmp.ne.s32.totalorder %s107, %s109
      %p113 = scmp.eq.s32.totalorder %s19, 0
      %p114 = por %p112, %p113
      %p115 = scmp.ne.s32.totalorder %s107, %s109
      %p116 = scmp.eq.s32.totalorder %s24, 7
      %p117 = por %p115, %p116
      %p118 = scmp.ne.s32.totalorder %s109, %s110
      %p119 = scmp.eq.s32.totalorder %s24, 0
      %p120 = por %p118, %p119
      %p121 = scmp.ne.s32.totalorder %s109, %s110
      %p122 = scmp.eq.s32.totalorder %s25, 7
      %p123 = por %p121, %p122
      %p125 = scmp.ne.s32.totalorder %s110, %s124
      %p126 = scmp.eq.s32.totalorder %s25, 0
      %p127 = por %p125, %p126
      %s129 = sadd.s32 %s128, 1
      %p132 = scmp.eq.s32.totalorder %s19, 7
      %p133 = scmp.ne.s32.totalorder %s128, %s130
      %p134 = scmp.eq.s32.totalorder %s19, 0
      %p135 = por %p133, %p134
      %p136 = scmp.ne.s32.totalorder %s128, %s130
      %p137 = scmp.eq.s32.totalorder %s24, 7
      %p138 = por %p136, %p137
      %p139 = scmp.ne.s32.totalorder %s130, %s131
      %p140 = scmp.eq.s32.totalorder %s24, 0
      %p141 = por %p139, %p140
      %p142 = scmp.ne.s32.totalorder %s130, %s131
      %p143 = scmp.eq.s32.totalorder %s25, 7
      %p144 = por %p142, %p143
      %p146 = scmp.ne.s32.totalorder %s131, %s145
      %p147 = scmp.eq.s32.totalorder %s25, 0
      %p148 = por %p146, %p147
      %s149 = smul.u32 %s26, %s27
      %s150 = smul.u32 %s38, %s34
      %s151 = ssub.s32 %s149, %s150
      %p152 = scmp.eq.s32.totalorder %s151, 0
      %s154 = sadd.s32 %s153, 1
      %s155 = scalar_select %p152, %s153, %s154
      %p158 = pneg %p152
      %p159 = scmp.eq.s32.totalorder %s19, 7
      %p160 = por %p158, %p159
      %p161 = scmp.ne.s32.totalorder %s153, %s156
      %p162 = scmp.eq.s32.totalorder %s19, 0
      %p163 = por %p161, %p162
      %p164 = scmp.ne.s32.totalorder %s153, %s156
      %p165 = scmp.eq.s32.totalorder %s24, 7
      %p166 = por %p164, %p165
      %p167 = scmp.ne.s32.totalorder %s156, %s157
      %p168 = scmp.eq.s32.totalorder %s24, 0
      %p169 = por %p167, %p168
      %p170 = scmp.ne.s32.totalorder %s156, %s157
      %p171 = scmp.eq.s32.totalorder %s25, 7
      %p172 = por %p170, %p171
      %p174 = scmp.ne.s32.totalorder %s157, %s173
      %p175 = scmp.eq.s32.totalorder %s25, 0
      %p176 = por %p174, %p175
      %p177 = scmp.le.s32.totalorder 1, %s19
      %p178 = scmp.lt.s32.totalorder %s19, 9
      %p179 = pnand %p177, %p178
      %p180 = pneg %p179
      // Predicated region
      $region9: #{conv_block.1} parent=5 // pred_check
        _
      $region10: #{conv_block.1} parent=5 // pred_check_branch
        %182 = sbr.rel (%p179) target = $region12
      $region11: #{conv_block.1} parent=5 // pred_region
        %s183 = ssub.s32 %s19, 1
        // Predicated region
        $region13: #{conv_block.1} parent=11 // pred_check
          %p184 = pneg %p78
        $region14: #{conv_block.1} parent=11 // pred_check_branch
          %186 = sbr.rel (%p184) target = $region16
        $region15: #{conv_block.1} parent=11 // pred_region
          %s188 = ssub.s32 288, 288
          %189 = vsyncadd [#allocation10], %s188
          %s190 = sshll.u32 [#allocation9], 4
          %s191 = int_to_ptr.vmem [resolvable:$true] %s190
          %196 = dma.hbm_to_vmem [thread:$0]  %s1, 288, %s191, [#allocation10], 32, 32, 2
        $region16: #{conv_block.1} parent=11 // pred_fallthru
          _
        // Predicated region
        $region17: #{conv_block.1} parent=11 // pred_check
          %p197 = pneg %p99
        $region18: #{conv_block.1} parent=11 // pred_check_branch
          %199 = sbr.rel (%p197) target = $region20
        $region19: #{conv_block.1} parent=11 // pred_region
          %s201 = ssub.s32 16, 16
          %202 = vsyncadd [#allocation10], %s201
          %s204 = sshll.u32 [#allocation11], 4
          %s205 = int_to_ptr.vmem [resolvable:$true] %s204
          %207 = dma.hbm_to_vmem [thread:$0]  %s2, 16, %s205, [#allocation10]
        $region20: #{conv_block.1} parent=11 // pred_fallthru
          _
        // Predicated region
        $region21: #{conv_block.1} parent=11 // pred_check
          %p208 = pneg %p120
        $region22: #{conv_block.1} parent=11 // pred_check_branch
          %210 = sbr.rel (%p208) target = $region24
        $region23: #{conv_block.1} parent=11 // pred_region
          %s212 = ssub.s32 16, 16
          %213 = vsyncadd [#allocation13], %s212
          %s215 = sshll.u32 [#allocation12], 4
          %s216 = int_to_ptr.vmem [resolvable:$true] %s215
          %218 = dma.hbm_to_vmem [thread:$0]  %s3, 16, %s216, [#allocation13]
        $region24: #{conv_block.1} parent=11 // pred_fallthru
          _
        // Predicated region
        $region25: #{conv_block.1} parent=11 // pred_check
          %p219 = pneg %p141
        $region26: #{conv_block.1} parent=11 // pred_check_branch
          %221 = sbr.rel (%p219) target = $region28
        $region27: #{conv_block.1} parent=11 // pred_region
          %s223 = ssub.s32 16, 16
          %224 = vsyncadd [#allocation13], %s223
          %s226 = sshll.u32 [#allocation14], 4
          %s227 = int_to_ptr.vmem [resolvable:$true] %s226
          %229 = dma.hbm_to_vmem [thread:$0]  %s4, 16, %s227, [#allocation13]
        $region28: #{conv_block.1} parent=11 // pred_fallthru
          _
      $region12: #{conv_block.1} parent=5 // pred_fallthru
        _
      %p230 = scmp.lt.s32.totalorder %s19, 8
      // Predicated region
      $region29: #{conv_block.1} parent=5 // pred_check
        %p231 = pneg %p230
      $region30: #{conv_block.1} parent=5 // pred_check_branch
        %233 = sbr.rel (%p231) target = $region32
      $region31: #{conv_block.1} parent=5 // pred_region
        // Predicated region
        $region33: #{conv_block.1} parent=31 // pred_check
          %p234 = pneg %p51
        $region34: #{conv_block.1} parent=31 // pred_check_branch
          %236 = sbr.rel (%p234) target = $region36
        $region35: #{conv_block.1} parent=31 // pred_region
          %s237 = sand.u32 %s41, 1
          %s238 = scalar_lea.sflag [#allocation7], %s237
          %s239 = sand.u32 %s41, 1
          %s240 = smul.addr %s239, 120
          %s241 = scalar_lea.vmem [#allocation6], %s240
          %s243 = ssub.s32 1920, 1920
          %244 = vsyncadd %s238, %s243
          %s245 = smul.addr %s27, 30
          %s246 = smul.addr %s245, 64
          %s247 = scalar_lea.hbm %s0, %s246
          %s248 = sshll.u32 %s241, 4
          %s249 = int_to_ptr.vmem [resolvable:$true] %s248
          %254 = dma.hbm_to_vmem [thread:$0]  %s247, 1920, %s249, %s238, 64, 64, 4
        $region36: #{conv_block.1} parent=31 // pred_fallthru
          _
      $region32: #{conv_block.1} parent=5 // pred_fallthru
        _
      %p255 = scmp.le.s32.totalorder 1, %s19
      %p256 = scmp.lt.s32.totalorder %s19, 9
      %p257 = pnand %p255, %p256
      %p258 = pneg %p257
      // Predicated region
      $region37: #{conv_block.1} parent=5 // pred_check
        _
      $region38: #{conv_block.1} parent=5 // pred_check_branch
        %260 = sbr.rel (%p257) target = $region40
      $region39: #{conv_block.1} parent=5 // pred_region
        %s261 = ssub.s32 %s19, 1
        %s262 = sand.u32 %s44, 1
        %s263 = scalar_lea.sflag [#allocation7], %s262
        %s264 = sand.u32 %s44, 1
        %s265 = smul.addr %s264, 120
        %s266 = scalar_lea.vmem [#allocation6], %s265
        // Predicated region
        $region41: #{conv_block.1} parent=39 // pred_check
          %p267 = pneg %p57
        $region42: #{conv_block.1} parent=39 // pred_check_branch
          %269 = sbr.rel (%p267) target = $region44
        $region43: #{conv_block.1} parent=39 // pred_region
          %270 = dma.done %s263, 1920
        $region44: #{conv_block.1} parent=39 // pred_fallthru
          _
        // Predicated region
        $region45: #{conv_block.1} parent=39 // pred_check
          %p271 = pneg %p78
        $region46: #{conv_block.1} parent=39 // pred_check_branch
          %273 = sbr.rel (%p271) target = $region48
        $region47: #{conv_block.1} parent=39 // pred_region
          %274 = dma.done [#allocation10], 288
        $region48: #{conv_block.1} parent=39 // pred_fallthru
          _
        // Predicated region
        $region49: #{conv_block.1} parent=39 // pred_check
          %p275 = pneg %p99
        $region50: #{conv_block.1} parent=39 // pred_check_branch
          %277 = sbr.rel (%p275) target = $region52
        $region51: #{conv_block.1} parent=39 // pred_region
          %278 = dma.done [#allocation10], 16
        $region52: #{conv_block.1} parent=39 // pred_fallthru
          _
        // Predicated region
        $region53: #{conv_block.1} parent=39 // pred_check
          %p279 = pneg %p120
        $region54: #{conv_block.1} parent=39 // pred_check_branch
          %281 = sbr.rel (%p279) target = $region56
        $region55: #{conv_block.1} parent=39 // pred_region
          %282 = dma.done [#allocation13], 16
        $region56: #{conv_block.1} parent=39 // pred_fallthru
          _
        // Predicated region
        $region57: #{conv_block.1} parent=39 // pred_check
          %p283 = pneg %p141
        $region58: #{conv_block.1} parent=39 // pred_check_branch
          %285 = sbr.rel (%p283) target = $region60
        $region59: #{conv_block.1} parent=39 // pred_region
          %286 = dma.done [#allocation13], 16
        $region60: #{conv_block.1} parent=39 // pred_fallthru
          _
        %s287 = sand.u32 %s44, 1
        %s288 = scalar_lea.sflag [#allocation7], %s287
        %s289 = sand.u32 %s44, 1
        %s290 = smul.addr %s289, 120
        %s291 = scalar_lea.vmem [#allocation6], %s290
        %p292 = pneg %p57
        %p293 = pneg %p54
        %p294 = pneg %p78
        %p295 = pneg %p75
        %p296 = pneg %p99
        %p297 = pneg %p96
        %p298 = pneg %p120
        %p299 = pneg %p117
        %p300 = pneg %p141
        %p301 = pneg %p138
        %p302 = pneg %p169
        %p303 = pneg %p166
        %s304 = sand.u32 %s156, 1
        %s305 = scalar_lea.sflag [#allocation8], %s304
        %s306 = sand.u32 %s156, 1
        %s307 = smul.addr %s306, 128
        %s308 = scalar_lea.vmem [#allocation15], %s307
        %s309 = smul.u32 %s28, %s29
        %s310 = smul.u32 16, %s309
        %p312 = scmp.eq.s32.totalorder %s28, 0
        %p313 = scmp.eq.s32.totalorder %s29, 0
        %p314 = pnand %p312, %p313
        %p315 = pneg %p314
        // Predicated region
        $region61: #{conv_block.1} parent=39 // pred_check
          _
        $region62: #{conv_block.1} parent=39 // pred_check_branch
          %317 = sbr.rel (%p314) target = $region64
        $region63: #{conv_block.1} parent=39 // pred_region
          %318 = vst [vmem:[#allocation2] sm:$0x1] 0.0
          %319 = vst [vmem:[#allocation3] sm:$0x1] 0.0
        $region64: #{conv_block.1} parent=39 // pred_fallthru
          _
        %v320 = vld [vmem:[%s266] sm:$0xf]
        %v321 = vld [vmem:[%s266 + $0x4] sm:$0xf]
        %v322 = vld [vmem:[%s266 + $0x8] sm:$0x1]
        %v323 = vld [vmem:[%s266 + $0xc] sm:$0xf]
        %v324 = vld [vmem:[%s266 + $0x10] sm:$0xf]
        %v325 = vld [vmem:[%s266 + $0x14] sm:$0x1]
        %v326 = vld [vmem:[%s266 + $0x18] sm:$0xf]
        %v327 = vld [vmem:[%s266 + $0x1c] sm:$0xf]
        %v328 = vld [vmem:[%s266 + $0x20] sm:$0x1]
        %v329 = vld [vmem:[%s266 + $0x24] sm:$0xf]
        %v330 = vld [vmem:[%s266 + $0x28] sm:$0xf]
        %v331 = vld [vmem:[%s266 + $0x2c] sm:$0x1]
        %v332 = vld [vmem:[%s266 + $0x30] sm:$0xf]
        %v333 = vld [vmem:[%s266 + $0x34] sm:$0xf]
        %v334 = vld [vmem:[%s266 + $0x38] sm:$0x1]
        %v335 = vld [vmem:[%s266 + $0x3c] sm:$0xf]
        %v336 = vld [vmem:[%s266 + $0x40] sm:$0xf]
        %v337 = vld [vmem:[%s266 + $0x44] sm:$0x1]
        %v338 = vld [vmem:[%s266 + $0x48] sm:$0xf]
        %v339 = vld [vmem:[%s266 + $0x4c] sm:$0xf]
        %v340 = vld [vmem:[%s266 + $0x50] sm:$0x1]
        %v341 = vld [vmem:[%s266 + $0x54] sm:$0xf]
        %v342 = vld [vmem:[%s266 + $0x58] sm:$0xf]
        %v343 = vld [vmem:[%s266 + $0x5c] sm:$0x1]
        %v344 = vld [vmem:[%s266 + $0x60] sm:$0xf]
        %v345 = vld [vmem:[%s266 + $0x64] sm:$0xf]
        %v346 = vld [vmem:[%s266 + $0x68] sm:$0x1]
        %v347 = vld [vmem:[%s266 + $0x6c] sm:$0xf]
        %v348 = vld [vmem:[%s266 + $0x70] sm:$0xf]
        %v349 = vld [vmem:[%s266 + $0x74] sm:$0x1]
        %v350 = vld [vmem:[#allocation9] sm:$0x3]
        %vm351 = vsmask.f32 3328
        %vm352 = vsmask.f32 7440
        %vm353 = vmor %vm351, %vm352
        %v355 = vshrl.u32 %v320, 16
        %v357 = vrot.slane %v355, 4
        %v358 = vshll.u32 %v320, 16
        %v360 = vrot.slane %v358, 5
        %v361 = vor.u32 %v357, %v360
        %v362 = vrot.slane %v361, 4
        %v364 = vshll.u32 %v321, 16
        %v366 = vrot.slane %v364, 5
        %v367 = vsel %vm353, %v362, %v366
        %v368 = vshrl.u32 %v321, 16
        %v370 = vrot.slane %v368, 4
        %v371 = vor.u32 %v370, %v366
        %v372 = vrot.slane %v371, 4
        %v374 = vshll.u32 %v322, 16
        %v376 = vrot.slane %v374, 5
        %v377 = vsel %vm353, %v372, %v376
        %v379 = vshrl.u32 %v323, 16
        %v381 = vrot.slane %v379, 4
        %v382 = vshll.u32 %v323, 16
        %v384 = vrot.slane %v382, 5
        %v385 = vor.u32 %v381, %v384
        %v386 = vrot.slane %v385, 4
        %v388 = vshll.u32 %v324, 16
        %v390 = vrot.slane %v388, 5
        %v391 = vsel %vm353, %v386, %v390
        %v392 = vshrl.u32 %v324, 16
        %v394 = vrot.slane %v392, 4
        %v395 = vor.u32 %v394, %v390
        %v396 = vrot.slane %v395, 4
        %v398 = vshll.u32 %v325, 16
        %v400 = vrot.slane %v398, 5
        %v401 = vsel %vm353, %v396, %v400
        %v403 = vshrl.u32 %v326, 16
        %v405 = vrot.slane %v403, 4
        %v406 = vshll.u32 %v326, 16
        %v408 = vrot.slane %v406, 5
        %v409 = vor.u32 %v405, %v408
        %v410 = vrot.slane %v409, 4
        %v412 = vshll.u32 %v327, 16
        %v414 = vrot.slane %v412, 5
        %v415 = vsel %vm353, %v410, %v414
        %v416 = vshrl.u32 %v327, 16
        %v418 = vrot.slane %v416, 4
        %v419 = vor.u32 %v418, %v414
        %v420 = vrot.slane %v419, 4
        %v422 = vshll.u32 %v328, 16
        %v424 = vrot.slane %v422, 5
        %v425 = vsel %vm353, %v420, %v424
        %v427 = vshrl.u32 %v329, 16
        %v429 = vrot.slane %v427, 4
        %v430 = vshll.u32 %v329, 16
        %v432 = vrot.slane %v430, 5
        %v433 = vor.u32 %v429, %v432
        %v434 = vrot.slane %v433, 4
        %v436 = vshll.u32 %v330, 16
        %v438 = vrot.slane %v436, 5
        %v439 = vsel %vm353, %v434, %v438
        %v440 = vshrl.u32 %v330, 16
        %v442 = vrot.slane %v440, 4
        %v443 = vor.u32 %v442, %v438
        %v444 = vrot.slane %v443, 4
        %v446 = vshll.u32 %v331, 16
        %v448 = vrot.slane %v446, 5
        %v449 = vsel %vm353, %v444, %v448
        %v451 = vshrl.u32 %v332, 16
        %v453 = vrot.slane %v451, 4
        %v454 = vshll.u32 %v332, 16
        %v456 = vrot.slane %v454, 5
        %v457 = vor.u32 %v453, %v456
        %v458 = vrot.slane %v457, 4
        %v460 = vshll.u32 %v333, 16
        %v462 = vrot.slane %v460, 5
        %v463 = vsel %vm353, %v458, %v462
        %v464 = vshrl.u32 %v333, 16
        %v466 = vrot.slane %v464, 4
        %v467 = vor.u32 %v466, %v462
        %v468 = vrot.slane %v467, 4
        %v470 = vshll.u32 %v334, 16
        %v472 = vrot.slane %v470, 5
        %v473 = vsel %vm353, %v468, %v472
        %v475 = vshrl.u32 %v335, 16
        %v477 = vrot.slane %v475, 4
        %v478 = vshll.u32 %v335, 16
        %v480 = vrot.slane %v478, 5
        %v481 = vor.u32 %v477, %v480
        %v482 = vrot.slane %v481, 4
        %v484 = vshll.u32 %v336, 16
        %v486 = vrot.slane %v484, 5
        %v487 = vsel %vm353, %v482, %v486
        %v488 = vshrl.u32 %v336, 16
        %v490 = vrot.slane %v488, 4
        %v491 = vor.u32 %v490, %v486
        %v492 = vrot.slane %v491, 4
        %v494 = vshll.u32 %v337, 16
        %v496 = vrot.slane %v494, 5
        %v497 = vsel %vm353, %v492, %v496
        %v499 = vshrl.u32 %v338, 16
        %v501 = vrot.slane %v499, 4
        %v502 = vshll.u32 %v338, 16
        %v504 = vrot.slane %v502, 5
        %v505 = vor.u32 %v501, %v504
        %v506 = vrot.slane %v505, 4
        %v508 = vshll.u32 %v339, 16
        %v510 = vrot.slane %v508, 5
        %v511 = vsel %vm353, %v506, %v510
        %v512 = vshrl.u32 %v339, 16
        %v514 = vrot.slane %v512, 4
        %v515 = vor.u32 %v514, %v510
        %v516 = vrot.slane %v515, 4
        %v518 = vshll.u32 %v340, 16
        %v520 = vrot.slane %v518, 5
        %v521 = vsel %vm353, %v516, %v520
        %v523 = vshrl.u32 %v341, 16
        %v525 = vrot.slane %v523, 4
        %v526 = vshll.u32 %v341, 16
        %v528 = vrot.slane %v526, 5
        %v529 = vor.u32 %v525, %v528
        %v530 = vrot.slane %v529, 4
        %v532 = vshll.u32 %v342, 16
        %v534 = vrot.slane %v532, 5
        %v535 = vsel %vm353, %v530, %v534
        %v536 = vshrl.u32 %v342, 16
        %v538 = vrot.slane %v536, 4
        %v539 = vor.u32 %v538, %v534
        %v540 = vrot.slane %v539, 4
        %v542 = vshll.u32 %v343, 16
        %v544 = vrot.slane %v542, 5
        %v545 = vsel %vm353, %v540, %v544
        %s546 = scalar_lea.vmem [#allocation9], 2
        %v547 = vld [vmem:[%s546] sm:$0x3]
        %v548 = vunpack.c.l.b16 %v367
        %v549 = vunpack.c.l.b16 %v377
        %v550 = vunpack.c.l.b16 %v391
        %v551 = vunpack.c.l.b16 %v401
        %v552 = vunpack.c.l.b16 %v415
        %v553 = vunpack.c.l.b16 %v425
        %v554 = vunpack.c.l.b16 %v439
        %v555 = vunpack.c.l.b16 %v449
        %v556 = vunpack.c.l.b16 %v463
        %v557 = vunpack.c.l.b16 %v473
        %v558 = vunpack.c.l.b16 %v487
        %v559 = vunpack.c.l.b16 %v497
        %v560 = vunpack.c.l.b16 %v511
        %v561 = vunpack.c.l.b16 %v521
        %v562 = vunpack.c.l.b16 %v535
        %v563 = vunpack.c.l.b16 %v545
        %v564 = vpack.c.b16 %v549, %v548
        %v565 = vpack.c.b16 %v551, %v550
        %v566 = vpack.c.b16 %v553, %v552
        %v567 = vpack.c.b16 %v555, %v554
        %v568 = vpack.c.b16 %v557, %v556
        %v569 = vpack.c.b16 %v559, %v558
        %v570 = vpack.c.b16 %v561, %v560
        %v571 = vpack.c.b16 %v563, %v562
        %vm572 = vcmask 31744
        %v574 = vsel %vm572, %v564, 0
        %v577 = vsel %vm572, %v565, 0
        %v580 = vsel %vm572, %v566, 0
        %v583 = vsel %vm572, %v567, 0
        %v586 = vsel %vm572, %v568, 0
        %v589 = vsel %vm572, %v569, 0
        %v592 = vsel %vm572, %v570, 0
        %v595 = vsel %vm572, %v571, 0
        %vm597 = vcmask 1041408
        %v599 = vsel %vm597, %v547, 0
        %601 = vmatprep.subr.bf16.mxu0 0
        %602 = vmatpush1.bf16.msra.mxu0 %v599
        %603 = vmatprep.subr.bf16.mxu0 0
        %604 = vmatpush1.bf16.msra.mxu0 0
        %605 = vmatprep.subr.bf16.mxu0 0
        %606 = vmatpush1.bf16.msra.mxu0 0
        %607 = vmatprep.subr.bf16.mxu0 0
        %608 = vmatpush1.bf16.msra.mxu0 0
        %609 = vmatprep.subr.bf16.mxu0 0
        %610 = vmatpush1.bf16.msra.mxu0 0
        %611 = vmatprep.subr.bf16.mxu0 0
        %612 = vmatpush1.bf16.msra.mxu0 0
        %613 = vmatprep.subr.bf16.mxu0 0
        %614 = vmatpush1.bf16.msra.mxu0 0
        %615 = vmatprep.subr.bf16.mxu0 0
        %616 = vmatpush1.bf16.msra.mxu0 0
        %617 = vmatprep.subr.bf16.mxu0 0
        %618 = vmatpush1.bf16.msra.mxu0 0
        %619 = vmatprep.subr.bf16.mxu0 0
        %620 = vmatpush1.bf16.msra.mxu0 0
        %621 = vmatprep.subr.bf16.mxu0 0
        %622 = vmatpush1.bf16.msra.mxu0 0
        %623 = vmatprep.subr.bf16.mxu0 0
        %624 = vmatpush1.bf16.msra.mxu0 0
        %625 = vmatprep.subr.bf16.mxu0 0
        %626 = vmatpush1.bf16.msra.mxu0 0
        %627 = vmatprep.subr.bf16.mxu0 0
        %628 = vmatpush1.bf16.msra.mxu0 0
        %629 = vmatprep.subr.bf16.mxu0 0
        %630 = vmatpush1.bf16.msra.mxu0 0
        %631 = vmatprep.subr.bf16.mxu0 0
        %632 = vmatpush1.bf16.msra.mxu0 0
        %633 = vmatprep.mubr.bf16.mxu0 0
        %634 = vmatmul.mubr.bf16.gmra.mrb[0].mxu0 %v574
        %v635 = vpop.f32.mrb[0].mxu0
        %v636 = vadd.f32 0.0, %v635
        %v637 = vpop.f32.mrb[0].mxu0
        %v638 = vpop.f32.mrb[0].mxu0
        %v639 = vadd.f32 0.0, %v638
        %v640 = vpop.f32.mrb[0].mxu0
        %641 = vmatprep.mubr.bf16.mxu0 0
        %642 = vmatmul.mubr.bf16.gmra.mrb[0].mxu0 %v577
        %v643 = vpop.f32.mrb[0].mxu0
        %v644 = vadd.f32 0.0, %v643
        %v645 = vpop.f32.mrb[0].mxu0
        %v646 = vpop.f32.mrb[0].mxu0
        %v647 = vadd.f32 0.0, %v646
        %v648 = vpop.f32.mrb[0].mxu0
        %649 = vmatprep.mubr.bf16.mxu0 0
        %650 = vmatmul.mubr.bf16.gmra.mrb[0].mxu0 %v580
        %v651 = vpop.f32.mrb[0].mxu0
        %v652 = vadd.f32 0.0, %v651
        %v653 = vpop.f32.mrb[0].mxu0
        %v654 = vpop.f32.mrb[0].mxu0
        %v655 = vadd.f32 0.0, %v654
        %v656 = vpop.f32.mrb[0].mxu0
        %657 = vmatprep.mubr.bf16.mxu0 0
        %658 = vmatmul.mubr.bf16.gmra.mrb[0].mxu0 %v583
        %v659 = vpop.f32.mrb[0].mxu0
        %v660 = vadd.f32 0.0, %v659
        %v661 = vpop.f32.mrb[0].mxu0
        %v662 = vpop.f32.mrb[0].mxu0
        %v663 = vadd.f32 0.0, %v662
        %v664 = vpop.f32.mrb[0].mxu0
        %665 = vmatprep.mubr.bf16.mxu0 0
        %666 = vmatmul.mubr.bf16.gmra.mrb[0].mxu0 %v586
        %v667 = vpop.f32.mrb[0].mxu0
        %v668 = vadd.f32 0.0, %v667
        %v669 = vpop.f32.mrb[0].mxu0
        %v670 = vpop.f32.mrb[0].mxu0
        %v671 = vadd.f32 0.0, %v670
        %v672 = vpop.f32.mrb[0].mxu0
        %673 = vmatprep.mubr.bf16.mxu0 0
        %674 = vmatmul.mubr.bf16.gmra.mrb[0].mxu0 %v589
        %v675 = vpop.f32.mrb[0].mxu0
        %v676 = vadd.f32 0.0, %v675
        %v677 = vpop.f32.mrb[0].mxu0
        %v678 = vpop.f32.mrb[0].mxu0
        %v679 = vadd.f32 0.0, %v678
        %v680 = vpop.f32.mrb[0].mxu0
        %681 = vmatprep.mubr.bf16.mxu0 0
        %682 = vmatmul.mubr.bf16.gmra.mrb[0].mxu0 %v592
        %v683 = vpop.f32.mrb[0].mxu0
        %v684 = vadd.f32 0.0, %v683
        %v685 = vpop.f32.mrb[0].mxu0
        %v686 = vpop.f32.mrb[0].mxu0
        %v687 = vadd.f32 0.0, %v686
        %v688 = vpop.f32.mrb[0].mxu0
        %689 = vmatprep.mubr.bf16.mxu0 0
        %690 = vmatmul.mubr.bf16.gmra.mrb[0].mxu0 %v595
        %v691 = vpop.f32.mrb[0].mxu0
        %v692 = vadd.f32 0.0, %v691
        %v693 = vpop.f32.mrb[0].mxu0
        %v694 = vpop.f32.mrb[0].mxu0
        %v695 = vadd.f32 0.0, %v694
        %v696 = vpop.f32.mrb[0].mxu0
        %697 = vdwg.mxu0
        %v714 = vunpack.c.l.b16 %v320
        %v715 = vunpack.c.l.b16 %v321
        %v716 = vunpack.c.l.b16 %v323
        %v717 = vunpack.c.l.b16 %v324
        %v718 = vunpack.c.l.b16 %v326
        %v719 = vunpack.c.l.b16 %v327
        %v720 = vunpack.c.l.b16 %v329
        %v721 = vunpack.c.l.b16 %v330
        %v722 = vunpack.c.l.b16 %v332
        %v723 = vunpack.c.l.b16 %v333
        %v724 = vunpack.c.l.b16 %v335
        %v725 = vunpack.c.l.b16 %v336
        %v726 = vunpack.c.l.b16 %v338
        %v727 = vunpack.c.l.b16 %v339
        %v728 = vunpack.c.l.b16 %v341
        %v729 = vunpack.c.l.b16 %v342
        %v730 = vpack.c.b16 %v715, %v714
        %v731 = vpack.c.b16 %v717, %v716
        %v732 = vpack.c.b16 %v719, %v718
        %v733 = vpack.c.b16 %v721, %v720
        %v734 = vpack.c.b16 %v723, %v722
        %v735 = vpack.c.b16 %v725, %v724
        %v736 = vpack.c.b16 %v727, %v726
        %v737 = vpack.c.b16 %v729, %v728
        %v739 = vsel %vm572, %v730, 0
        %v742 = vsel %vm572, %v731, 0
        %v745 = vsel %vm572, %v732, 0
        %v748 = vsel %vm572, %v733, 0
        %v751 = vsel %vm572, %v734, 0
        %v754 = vsel %vm572, %v735, 0
        %v757 = vsel %vm572, %v736, 0
        %v760 = vsel %vm572, %v737, 0
        %v763 = vsel %vm597, %v350, 0
        %765 = vmatprep.subr.bf16.mxu0 0
        %766 = vmatpush1.bf16.msra.mxu0 %v763
        %767 = vmatprep.subr.bf16.mxu0 0
        %768 = vmatpush1.bf16.msra.mxu0 0
        %769 = vmatprep.subr.bf16.mxu0 0
        %770 = vmatpush1.bf16.msra.mxu0 0
        %771 = vmatprep.subr.bf16.mxu0 0
        %772 = vmatpush1.bf16.msra.mxu0 0
        %773 = vmatprep.subr.bf16.mxu0 0
        %774 = vmatpush1.bf16.msra.mxu0 0
        %775 = vmatprep.subr.bf16.mxu0 0
        %776 = vmatpush1.bf16.msra.mxu0 0
        %777 = vmatprep.subr.bf16.mxu0 0
        %778 = vmatpush1.bf16.msra.mxu0 0
        %779 = vmatprep.subr.bf16.mxu0 0
        %780 = vmatpush1.bf16.msra.mxu0 0
        %781 = vmatprep.subr.bf16.mxu0 0
        %782 = vmatpush1.bf16.msra.mxu0 0
        %783 = vmatprep.subr.bf16.mxu0 0
        %784 = vmatpush1.bf16.msra.mxu0 0
        %785 = vmatprep.subr.bf16.mxu0 0
        %786 = vmatpush1.bf16.msra.mxu0 0
        %787 = vmatprep.subr.bf16.mxu0 0
        %788 = vmatpush1.bf16.msra.mxu0 0
        %789 = vmatprep.subr.bf16.mxu0 0
        %790 = vmatpush1.bf16.msra.mxu0 0
        %791 = vmatprep.subr.bf16.mxu0 0
        %792 = vmatpush1.bf16.msra.mxu0 0
        %793 = vmatprep.subr.bf16.mxu0 0
        %794 = vmatpush1.bf16.msra.mxu0 0
        %795 = vmatprep.subr.bf16.mxu0 0
        %796 = vmatpush1.bf16.msra.mxu0 0
        %797 = vmatprep.mubr.bf16.mxu0 0
        %798 = vmatmul.mubr.bf16.gmra.mrb[0].mxu0 %v739
        %v799 = vpop.f32.mrb[0].mxu0
        %v800 = vadd.f32 %v636, %v799
        %v801 = vpop.f32.mrb[0].mxu0
        %v802 = vpop.f32.mrb[0].mxu0
        %v803 = vadd.f32 %v639, %v802
        %v804 = vpop.f32.mrb[0].mxu0
        %805 = vmatprep.mubr.bf16.mxu0 0
        %806 = vmatmul.mubr.bf16.gmra.mrb[0].mxu0 %v742
        %v807 = vpop.f32.mrb[0].mxu0
        %v808 = vadd.f32 %v644, %v807
        %v809 = vpop.f32.mrb[0].mxu0
        %v810 = vpop.f32.mrb[0].mxu0
        %v811 = vadd.f32 %v647, %v810
        %v812 = vpop.f32.mrb[0].mxu0
        %813 = vmatprep.mubr.bf16.mxu0 0
        %814 = vmatmul.mubr.bf16.gmra.mrb[0].mxu0 %v745
        %v815 = vpop.f32.mrb[0].mxu0
        %v816 = vadd.f32 %v652, %v815
        %v817 = vpop.f32.mrb[0].mxu0
        %v818 = vpop.f32.mrb[0].mxu0
        %v819 = vadd.f32 %v655, %v818
        %v820 = vpop.f32.mrb[0].mxu0
        %821 = vmatprep.mubr.bf16.mxu0 0
        %822 = vmatmul.mubr.bf16.gmra.mrb[0].mxu0 %v748
        %v823 = vpop.f32.mrb[0].mxu0
        %v824 = vadd.f32 %v660, %v823
        %v825 = vpop.f32.mrb[0].mxu0
        %v826 = vpop.f32.mrb[0].mxu0
        %v827 = vadd.f32 %v663, %v826
        %v828 = vpop.f32.mrb[0].mxu0
        %829 = vmatprep.mubr.bf16.mxu0 0
        %830 = vmatmul.mubr.bf16.gmra.mrb[0].mxu0 %v751
        %v831 = vpop.f32.mrb[0].mxu0
        %v832 = vadd.f32 %v668, %v831
        %v833 = vpop.f32.mrb[0].mxu0
        %v834 = vpop.f32.mrb[0].mxu0
        %v835 = vadd.f32 %v671, %v834
        %v836 = vpop.f32.mrb[0].mxu0
        %837 = vmatprep.mubr.bf16.mxu0 0
        %838 = vmatmul.mubr.bf16.gmra.mrb[0].mxu0 %v754
        %v839 = vpop.f32.mrb[0].mxu0
        %v840 = vadd.f32 %v676, %v839
        %v841 = vpop.f32.mrb[0].mxu0
        %v842 = vpop.f32.mrb[0].mxu0
        %v843 = vadd.f32 %v679, %v842
        %v844 = vpop.f32.mrb[0].mxu0
        %845 = vmatprep.mubr.bf16.mxu0 0
        %846 = vmatmul.mubr.bf16.gmra.mrb[0].mxu0 %v757
        %v847 = vpop.f32.mrb[0].mxu0
        %v848 = vadd.f32 %v684, %v847
        %v849 = vpop.f32.mrb[0].mxu0
        %v850 = vpop.f32.mrb[0].mxu0
        %v851 = vadd.f32 %v687, %v850
        %v852 = vpop.f32.mrb[0].mxu0
        %853 = vmatprep.mubr.bf16.mxu0 0
        %854 = vmatmul.mubr.bf16.gmra.mrb[0].mxu0 %v760
        %v855 = vpop.f32.mrb[0].mxu0
        %v856 = vadd.f32 %v692, %v855
        %v857 = vpop.f32.mrb[0].mxu0
        %v858 = vpop.f32.mrb[0].mxu0
        %v859 = vadd.f32 %v695, %v858
        %v860 = vpop.f32.mrb[0].mxu0
        %861 = vdwg.mxu0
        %vm870 = vcmask 1042432
        %vm871 = vcmask 1046532
        %vm872 = vmor %vm870, %vm871
        %v873 = vrot.slane %v320, 5
        %v874 = vrot.slane %v873, 4
        %v875 = vrot.slane %v321, 5
        %v876 = vsel %vm872, %v874, %v875
        %v877 = vrot.slane %v875, 4
        %v878 = vrot.slane %v322, 5
        %v879 = vsel %vm872, %v877, %v878
        %v880 = vrot.slane %v323, 5
        %v881 = vrot.slane %v880, 4
        %v882 = vrot.slane %v324, 5
        %v883 = vsel %vm872, %v881, %v882
        %v884 = vrot.slane %v882, 4
        %v885 = vrot.slane %v325, 5
        %v886 = vsel %vm872, %v884, %v885
        %v887 = vrot.slane %v326, 5
        %v888 = vrot.slane %v887, 4
        %v889 = vrot.slane %v327, 5
        %v890 = vsel %vm872, %v888, %v889
        %v891 = vrot.slane %v889, 4
        %v892 = vrot.slane %v328, 5
        %v893 = vsel %vm872, %v891, %v892
        %v894 = vrot.slane %v329, 5
        %v895 = vrot.slane %v894, 4
        %v896 = vrot.slane %v330, 5
        %v897 = vsel %vm872, %v895, %v896
        %v898 = vrot.slane %v896, 4
        %v899 = vrot.slane %v331, 5
        %v900 = vsel %vm872, %v898, %v899
        %v901 = vrot.slane %v332, 5
        %v902 = vrot.slane %v901, 4
        %v903 = vrot.slane %v333, 5
        %v904 = vsel %vm872, %v902, %v903
        %v905 = vrot.slane %v903, 4
        %v906 = vrot.slane %v334, 5
        %v907 = vsel %vm872, %v905, %v906
        %v908 = vrot.slane %v335, 5
        %v909 = vrot.slane %v908, 4
        %v910 = vrot.slane %v336, 5
        %v911 = vsel %vm872, %v909, %v910
        %v912 = vrot.slane %v910, 4
        %v913 = vrot.slane %v337, 5
        %v914 = vsel %vm872, %v912, %v913
        %v915 = vrot.slane %v338, 5
        %v916 = vrot.slane %v915, 4
        %v917 = vrot.slane %v339, 5
        %v918 = vsel %vm872, %v916, %v917
        %v919 = vrot.slane %v917, 4
        %v920 = vrot.slane %v340, 5
        %v921 = vsel %vm872, %v919, %v920
        %v922 = vrot.slane %v341, 5
        %v923 = vrot.slane %v922, 4
        %v924 = vrot.slane %v342, 5
        %v925 = vsel %vm872, %v923, %v924
        %v926 = vrot.slane %v924, 4
        %v927 = vrot.slane %v343, 5
        %v928 = vsel %vm872, %v926, %v927
        %s929 = scalar_lea.vmem [#allocation9], 4
        %v930 = vld [vmem:[%s929] sm:$0x3]
        %v931 = vunpack.c.l.b16 %v876
        %v932 = vunpack.c.l.b16 %v879
        %v933 = vunpack.c.l.b16 %v883
        %v934 = vunpack.c.l.b16 %v886
        %v935 = vunpack.c.l.b16 %v890
        %v936 = vunpack.c.l.b16 %v893
        %v937 = vunpack.c.l.b16 %v897
        %v938 = vunpack.c.l.b16 %v900
        %v939 = vunpack.c.l.b16 %v904
        %v940 = vunpack.c.l.b16 %v907
        %v941 = vunpack.c.l.b16 %v911
        %v942 = vunpack.c.l.b16 %v914
        %v943 = vunpack.c.l.b16 %v918
        %v944 = vunpack.c.l.b16 %v921
        %v945 = vunpack.c.l.b16 %v925
        %v946 = vunpack.c.l.b16 %v928
        %v947 = vpack.c.b16 %v932, %v931
        %v948 = vpack.c.b16 %v934, %v933
        %v949 = vpack.c.b16 %v936, %v935
        %v950 = vpack.c.b16 %v938, %v937
        %v951 = vpack.c.b16 %v940, %v939
        %v952 = vpack.c.b16 %v942, %v941
        %v953 = vpack.c.b16 %v944, %v943
        %v954 = vpack.c.b16 %v946, %v945
        %v956 = vsel %vm572, %v947, 0
        %v959 = vsel %vm572, %v948, 0
        %v962 = vsel %vm572, %v949, 0
        %v965 = vsel %vm572, %v950, 0
        %v968 = vsel %vm572, %v951, 0
        %v971 = vsel %vm572, %v952, 0
        %v974 = vsel %vm572, %v953, 0
        %v977 = vsel %vm572, %v954, 0
        %v980 = vsel %vm597, %v930, 0
        %982 = vmatprep.subr.bf16.mxu0 0
        %983 = vmatpush1.bf16.msra.mxu0 %v980
        %984 = vmatprep.subr.bf16.mxu0 0
        %985 = vmatpush1.bf16.msra.mxu0 0
        %986 = vmatprep.subr.bf16.mxu0 0
        %987 = vmatpush1.bf16.msra.mxu0 0
        %988 = vmatprep.subr.bf16.mxu0 0
        %989 = vmatpush1.bf16.msra.mxu0 0
        %990 = vmatprep.subr.bf16.mxu0 0
        %991 = vmatpush1.bf16.msra.mxu0 0
        %992 = vmatprep.subr.bf16.mxu0 0
        %993 = vmatpush1.bf16.msra.mxu0 0
        %994 = vmatprep.subr.bf16.mxu0 0
        %995 = vmatpush1.bf16.msra.mxu0 0
        %996 = vmatprep.subr.bf16.mxu0 0
        %997 = vmatpush1.bf16.msra.mxu0 0
        %998 = vmatprep.subr.bf16.mxu0 0
        %999 = vmatpush1.bf16.msra.mxu0 0
        %1000 = vmatprep.subr.bf16.mxu0 0
        %1001 = vmatpush1.bf16.msra.mxu0 0
        %1002 = vmatprep.subr.bf16.mxu0 0
        %1003 = vmatpush1.bf16.msra.mxu0 0
        %1004 = vmatprep.subr.bf16.mxu0 0
        %1005 = vmatpush1.bf16.msra.mxu0 0
        %1006 = vmatprep.subr.bf16.mxu0 0
        %1007 = vmatpush1.bf16.msra.mxu0 0
        %1008 = vmatprep.subr.bf16.mxu0 0
        %1009 = vmatpush1.bf16.msra.mxu0 0
        %1010 = vmatprep.subr.bf16.mxu0 0
        %1011 = vmatpush1.bf16.msra.mxu0 0
        %1012 = vmatprep.subr.bf16.mxu0 0
        %1013 = vmatpush1.bf16.msra.mxu0 0
        %1014 = vmatprep.mubr.bf16.mxu0 0
        %1015 = vmatmul.mubr.bf16.gmra.mrb[0].mxu0 %v956
        %v1016 = vpop.f32.mrb[0].mxu0
        %v1017 = vadd.f32 0.0, %v1016
        %v1018 = vpop.f32.mrb[0].mxu0
        %v1019 = vpop.f32.mrb[0].mxu0
        %v1020 = vadd.f32 0.0, %v1019
        %v1021 = vpop.f32.mrb[0].mxu0
        %1022 = vmatprep.mubr.bf16.mxu0 0
        %1023 = vmatmul.mubr.bf16.gmra.mrb[0].mxu0 %v959
        %v1024 = vpop.f32.mrb[0].mxu0
        %v1025 = vadd.f32 0.0, %v1024
        %v1026 = vpop.f32.mrb[0].mxu0
        %v1027 = vpop.f32.mrb[0].mxu0
        %v1028 = vadd.f32 0.0, %v1027
        %v1029 = vpop.f32.mrb[0].mxu0
        %1030 = vmatprep.mubr.bf16.mxu0 0
        %1031 = vmatmul.mubr.bf16.gmra.mrb[0].mxu0 %v962
        %v1032 = vpop.f32.mrb[0].mxu0
        %v1033 = vadd.f32 0.0, %v1032
        %v1034 = vpop.f32.mrb[0].mxu0
        %v1035 = vpop.f32.mrb[0].mxu0
        %v1036 = vadd.f32 0.0, %v1035
        %v1037 = vpop.f32.mrb[0].mxu0
        %1038 = vmatprep.mubr.bf16.mxu0 0
        %1039 = vmatmul.mubr.bf16.gmra.mrb[0].mxu0 %v965
        %v1040 = vpop.f32.mrb[0].mxu0
        %v1041 = vadd.f32 0.0, %v1040
        %v1042 = vpop.f32.mrb[0].mxu0
        %v1043 = vpop.f32.mrb[0].mxu0
        %v1044 = vadd.f32 0.0, %v1043
        %v1045 = vpop.f32.mrb[0].mxu0
        %1046 = vmatprep.mubr.bf16.mxu0 0
        %1047 = vmatmul.mubr.bf16.gmra.mrb[0].mxu0 %v968
        %v1048 = vpop.f32.mrb[0].mxu0
        %v1049 = vadd.f32 0.0, %v1048
        %v1050 = vpop.f32.mrb[0].mxu0
        %v1051 = vpop.f32.mrb[0].mxu0
        %v1052 = vadd.f32 0.0, %v1051
        %v1053 = vpop.f32.mrb[0].mxu0
        %1054 = vmatprep.mubr.bf16.mxu0 0
        %1055 = vmatmul.mubr.bf16.gmra.mrb[0].mxu0 %v971
        %v1056 = vpop.f32.mrb[0].mxu0
        %v1057 = vadd.f32 0.0, %v1056
        %v1058 = vpop.f32.mrb[0].mxu0
        %v1059 = vpop.f32.mrb[0].mxu0
        %v1060 = vadd.f32 0.0, %v1059
        %v1061 = vpop.f32.mrb[0].mxu0
        %1062 = vmatprep.mubr.bf16.mxu0 0
        %1063 = vmatmul.mubr.bf16.gmra.mrb[0].mxu0 %v974
        %v1064 = vpop.f32.mrb[0].mxu0
        %v1065 = vadd.f32 0.0, %v1064
        %v1066 = vpop.f32.mrb[0].mxu0
        %v1067 = vpop.f32.mrb[0].mxu0
        %v1068 = vadd.f32 0.0, %v1067
        %v1069 = vpop.f32.mrb[0].mxu0
        %1070 = vmatprep.mubr.bf16.mxu0 0
        %1071 = vmatmul.mubr.bf16.gmra.mrb[0].mxu0 %v977
        %v1072 = vpop.f32.mrb[0].mxu0
        %v1073 = vadd.f32 0.0, %v1072
        %v1074 = vpop.f32.mrb[0].mxu0
        %v1075 = vpop.f32.mrb[0].mxu0
        %v1076 = vadd.f32 0.0, %v1075
        %v1077 = vpop.f32.mrb[0].mxu0
        %1078 = vdwg.mxu0
        %v1079 = vadd.f32 %v800, %v1017
        %v1080 = vadd.f32 %v803, %v1020
        %v1081 = vadd.f32 %v808, %v1025
        %v1082 = vadd.f32 %v811, %v1028
        %v1083 = vadd.f32 %v816, %v1033
        %v1084 = vadd.f32 %v819, %v1036
        %v1085 = vadd.f32 %v824, %v1041
        %v1086 = vadd.f32 %v827, %v1044
        %v1087 = vadd.f32 %v832, %v1049
        %v1088 = vadd.f32 %v835, %v1052
        %v1089 = vadd.f32 %v840, %v1057
        %v1090 = vadd.f32 %v843, %v1060
        %v1091 = vadd.f32 %v848, %v1065
        %v1092 = vadd.f32 %v851, %v1068
        %v1093 = vadd.f32 %v856, %v1073
        %v1094 = vadd.f32 %v859, %v1076
        %s1095 = scalar_lea.vmem [#allocation9], 6
        %v1096 = vld [vmem:[%s1095] sm:$0x3]
        %v1099 = vunpack.c.l.b16 %v344
        %v1100 = vunpack.c.l.b16 %v345
        %v1101 = vpack.c.b16 %v1100, %v1099
        %v1103 = vsel %vm572, %v1101, 0
        %v1106 = vsel %vm597, %v1096, 0
        %1108 = vmatprep.subr.bf16.mxu0 0
        %1109 = vmatpush1.bf16.msra.mxu0 %v1106
        %1110 = vmatprep.subr.bf16.mxu0 0
        %1111 = vmatpush1.bf16.msra.mxu0 0
        %1112 = vmatprep.subr.bf16.mxu0 0
        %1113 = vmatpush1.bf16.msra.mxu0 0
        %1114 = vmatprep.subr.bf16.mxu0 0
        %1115 = vmatpush1.bf16.msra.mxu0 0
        %1116 = vmatprep.subr.bf16.mxu0 0
        %1117 = vmatpush1.bf16.msra.mxu0 0
        %1118 = vmatprep.subr.bf16.mxu0 0
        %1119 = vmatpush1.bf16.msra.mxu0 0
        %1120 = vmatprep.subr.bf16.mxu0 0
        %1121 = vmatpush1.bf16.msra.mxu0 0
        %1122 = vmatprep.subr.bf16.mxu0 0
        %1123 = vmatpush1.bf16.msra.mxu0 0
        %1124 = vmatprep.subr.bf16.mxu0 0
        %1125 = vmatpush1.bf16.msra.mxu0 0
        %1126 = vmatprep.subr.bf16.mxu0 0
        %1127 = vmatpush1.bf16.msra.mxu0 0
        %1128 = vmatprep.subr.bf16.mxu0 0
        %1129 = vmatpush1.bf16.msra.mxu0 0
        %1130 = vmatprep.subr.bf16.mxu0 0
        %1131 = vmatpush1.bf16.msra.mxu0 0
        %1132 = vmatprep.subr.bf16.mxu0 0
        %1133 = vmatpush1.bf16.msra.mxu0 0
        %1134 = vmatprep.subr.bf16.mxu0 0
        %1135 = vmatpush1.bf16.msra.mxu0 0
        %1136 = vmatprep.subr.bf16.mxu0 0
        %1137 = vmatpush1.bf16.msra.mxu0 0
        %1138 = vmatprep.subr.bf16.mxu0 0
        %1139 = vmatpush1.bf16.msra.mxu0 0
        %1140 = vmatprep.mubr.bf16.mxu0 0
        %1141 = vmatmul.mubr.bf16.gmra.mrb[0].mxu0 %v742
        %v1142 = vpop.f32.mrb[0].mxu0
        %v1143 = vadd.f32 0.0, %v1142
        %v1144 = vpop.f32.mrb[0].mxu0
        %v1145 = vpop.f32.mrb[0].mxu0
        %v1146 = vadd.f32 0.0, %v1145
        %v1147 = vpop.f32.mrb[0].mxu0
        %1148 = vmatprep.mubr.bf16.mxu0 0
        %1149 = vmatmul.mubr.bf16.gmra.mrb[0].mxu0 %v745
        %v1150 = vpop.f32.mrb[0].mxu0
        %v1151 = vadd.f32 0.0, %v1150
        %v1152 = vpop.f32.mrb[0].mxu0
        %v1153 = vpop.f32.mrb[0].mxu0
        %v1154 = vadd.f32 0.0, %v1153
        %v1155 = vpop.f32.mrb[0].mxu0
        %1156 = vmatprep.mubr.bf16.mxu0 0
        %1157 = vmatmul.mubr.bf16.gmra.mrb[0].mxu0 %v748
        %v1158 = vpop.f32.mrb[0].mxu0
        %v1159 = vadd.f32 0.0, %v1158
        %v1160 = vpop.f32.mrb[0].mxu0
        %v1161 = vpop.f32.mrb[0].mxu0
        %v1162 = vadd.f32 0.0, %v1161
        %v1163 = vpop.f32.mrb[0].mxu0
        %1164 = vmatprep.mubr.bf16.mxu0 0
        %1165 = vmatmul.mubr.bf16.gmra.mrb[0].mxu0 %v751
        %v1166 = vpop.f32.mrb[0].mxu0
        %v1167 = vadd.f32 0.0, %v1166
        %v1168 = vpop.f32.mrb[0].mxu0
        %v1169 = vpop.f32.mrb[0].mxu0
        %v1170 = vadd.f32 0.0, %v1169
        %v1171 = vpop.f32.mrb[0].mxu0
        %1172 = vmatprep.mubr.bf16.mxu0 0
        %1173 = vmatmul.mubr.bf16.gmra.mrb[0].mxu0 %v754
        %v1174 = vpop.f32.mrb[0].mxu0
        %v1175 = vadd.f32 0.0, %v1174
        %v1176 = vpop.f32.mrb[0].mxu0
        %v1177 = vpop.f32.mrb[0].mxu0
        %v1178 = vadd.f32 0.0, %v1177
        %v1179 = vpop.f32.mrb[0].mxu0
        %1180 = vmatprep.mubr.bf16.mxu0 0
        %1181 = vmatmul.mubr.bf16.gmra.mrb[0].mxu0 %v757
        %v1182 = vpop.f32.mrb[0].mxu0
        %v1183 = vadd.f32 0.0, %v1182
        %v1184 = vpop.f32.mrb[0].mxu0
        %v1185 = vpop.f32.mrb[0].mxu0
        %v1186 = vadd.f32 0.0, %v1185
        %v1187 = vpop.f32.mrb[0].mxu0
        %1188 = vmatprep.mubr.bf16.mxu0 0
        %1189 = vmatmul.mubr.bf16.gmra.mrb[0].mxu0 %v760
        %v1190 = vpop.f32.mrb[0].mxu0
        %v1191 = vadd.f32 0.0, %v1190
        %v1192 = vpop.f32.mrb[0].mxu0
        %v1193 = vpop.f32.mrb[0].mxu0
        %v1194 = vadd.f32 0.0, %v1193
        %v1195 = vpop.f32.mrb[0].mxu0
        %1196 = vmatprep.mubr.bf16.mxu0 0
        %1197 = vmatmul.mubr.bf16.gmra.mrb[0].mxu0 %v1103
        %v1198 = vpop.f32.mrb[0].mxu0
        %v1199 = vadd.f32 0.0, %v1198
        %v1200 = vpop.f32.mrb[0].mxu0
        %v1201 = vpop.f32.mrb[0].mxu0
        %v1202 = vadd.f32 0.0, %v1201
        %v1203 = vpop.f32.mrb[0].mxu0
        %1204 = vdwg.mxu0
        %v1205 = vadd.f32 %v1079, %v1143
        %v1206 = vadd.f32 %v1080, %v1146
        %v1207 = vadd.f32 %v1081, %v1151
        %v1208 = vadd.f32 %v1082, %v1154
        %v1209 = vadd.f32 %v1083, %v1159
        %v1210 = vadd.f32 %v1084, %v1162
        %v1211 = vadd.f32 %v1085, %v1167
        %v1212 = vadd.f32 %v1086, %v1170
        %v1213 = vadd.f32 %v1087, %v1175
        %v1214 = vadd.f32 %v1088, %v1178
        %v1215 = vadd.f32 %v1089, %v1183
        %v1216 = vadd.f32 %v1090, %v1186
        %v1217 = vadd.f32 %v1091, %v1191
        %v1218 = vadd.f32 %v1092, %v1194
        %v1219 = vadd.f32 %v1093, %v1199
        %v1220 = vadd.f32 %v1094, %v1202
        %v1222 = vshrl.u32 %v344, 16
        %v1224 = vrot.slane %v1222, 4
        %v1225 = vshll.u32 %v344, 16
        %v1227 = vrot.slane %v1225, 5
        %v1228 = vor.u32 %v1224, %v1227
        %v1229 = vrot.slane %v1228, 4
        %v1231 = vshll.u32 %v345, 16
        %v1233 = vrot.slane %v1231, 5
        %v1234 = vsel %vm353, %v1229, %v1233
        %v1235 = vshrl.u32 %v345, 16
        %v1237 = vrot.slane %v1235, 4
        %v1238 = vor.u32 %v1237, %v1233
        %v1239 = vrot.slane %v1238, 4
        %v1241 = vshll.u32 %v346, 16
        %v1243 = vrot.slane %v1241, 5
        %v1244 = vsel %vm353, %v1239, %v1243
        %s1245 = scalar_lea.vmem [#allocation9], 8
        %v1246 = vld [vmem:[%s1245] sm:$0x3]
        %v1247 = vunpack.c.l.b16 %v1234
        %v1248 = vunpack.c.l.b16 %v1244
        %v1249 = vpack.c.b16 %v1248, %v1247
        %v1251 = vsel %vm572, %v1249, 0
        %v1254 = vsel %vm597, %v1246, 0
        %1256 = vmatprep.subr.bf16.mxu0 0
        %1257 = vmatpush1.bf16.msra.mxu0 %v1254
        %1258 = vmatprep.subr.bf16.mxu0 0
        %1259 = vmatpush1.bf16.msra.mxu0 0
        %1260 = vmatprep.subr.bf16.mxu0 0
        %1261 = vmatpush1.bf16.msra.mxu0 0
        %1262 = vmatprep.subr.bf16.mxu0 0
        %1263 = vmatpush1.bf16.msra.mxu0 0
        %1264 = vmatprep.subr.bf16.mxu0 0
        %1265 = vmatpush1.bf16.msra.mxu0 0
        %1266 = vmatprep.subr.bf16.mxu0 0
        %1267 = vmatpush1.bf16.msra.mxu0 0
        %1268 = vmatprep.subr.bf16.mxu0 0
        %1269 = vmatpush1.bf16.msra.mxu0 0
        %1270 = vmatprep.subr.bf16.mxu0 0
        %1271 = vmatpush1.bf16.msra.mxu0 0
        %1272 = vmatprep.subr.bf16.mxu0 0
        %1273 = vmatpush1.bf16.msra.mxu0 0
        %1274 = vmatprep.subr.bf16.mxu0 0
        %1275 = vmatpush1.bf16.msra.mxu0 0
        %1276 = vmatprep.subr.bf16.mxu0 0
        %1277 = vmatpush1.bf16.msra.mxu0 0
        %1278 = vmatprep.subr.bf16.mxu0 0
        %1279 = vmatpush1.bf16.msra.mxu0 0
        %1280 = vmatprep.subr.bf16.mxu0 0
        %1281 = vmatpush1.bf16.msra.mxu0 0
        %1282 = vmatprep.subr.bf16.mxu0 0
        %1283 = vmatpush1.bf16.msra.mxu0 0
        %1284 = vmatprep.subr.bf16.mxu0 0
        %1285 = vmatpush1.bf16.msra.mxu0 0
        %1286 = vmatprep.subr.bf16.mxu0 0
        %1287 = vmatpush1.bf16.msra.mxu0 0
        %1288 = vmatprep.mubr.bf16.mxu0 0
        %1289 = vmatmul.mubr.bf16.gmra.mrb[0].mxu0 %v577
        %v1290 = vpop.f32.mrb[0].mxu0
        %v1291 = vadd.f32 0.0, %v1290
        %v1292 = vpop.f32.mrb[0].mxu0
        %v1293 = vpop.f32.mrb[0].mxu0
        %v1294 = vadd.f32 0.0, %v1293
        %v1295 = vpop.f32.mrb[0].mxu0
        %1296 = vmatprep.mubr.bf16.mxu0 0
        %1297 = vmatmul.mubr.bf16.gmra.mrb[0].mxu0 %v580
        %v1298 = vpop.f32.mrb[0].mxu0
        %v1299 = vadd.f32 0.0, %v1298
        %v1300 = vpop.f32.mrb[0].mxu0
        %v1301 = vpop.f32.mrb[0].mxu0
        %v1302 = vadd.f32 0.0, %v1301
        %v1303 = vpop.f32.mrb[0].mxu0
        %1304 = vmatprep.mubr.bf16.mxu0 0
        %1305 = vmatmul.mubr.bf16.gmra.mrb[0].mxu0 %v583
        %v1306 = vpop.f32.mrb[0].mxu0
        %v1307 = vadd.f32 0.0, %v1306
        %v1308 = vpop.f32.mrb[0].mxu0
        %v1309 = vpop.f32.mrb[0].mxu0
        %v1310 = vadd.f32 0.0, %v1309
        %v1311 = vpop.f32.mrb[0].mxu0
        %1312 = vmatprep.mubr.bf16.mxu0 0
        %1313 = vmatmul.mubr.bf16.gmra.mrb[0].mxu0 %v586
        %v1314 = vpop.f32.mrb[0].mxu0
        %v1315 = vadd.f32 0.0, %v1314
        %v1316 = vpop.f32.mrb[0].mxu0
        %v1317 = vpop.f32.mrb[0].mxu0
        %v1318 = vadd.f32 0.0, %v1317
        %v1319 = vpop.f32.mrb[0].mxu0
        %1320 = vmatprep.mubr.bf16.mxu0 0
        %1321 = vmatmul.mubr.bf16.gmra.mrb[0].mxu0 %v589
        %v1322 = vpop.f32.mrb[0].mxu0
        %v1323 = vadd.f32 0.0, %v1322
        %v1324 = vpop.f32.mrb[0].mxu0
        %v1325 = vpop.f32.mrb[0].mxu0
        %v1326 = vadd.f32 0.0, %v1325
        %v1327 = vpop.f32.mrb[0].mxu0
        %1328 = vmatprep.mubr.bf16.mxu0 0
        %1329 = vmatmul.mubr.bf16.gmra.mrb[0].mxu0 %v592
        %v1330 = vpop.f32.mrb[0].mxu0
        %v1331 = vadd.f32 0.0, %v1330
        %v1332 = vpop.f32.mrb[0].mxu0
        %v1333 = vpop.f32.mrb[0].mxu0
        %v1334 = vadd.f32 0.0, %v1333
        %v1335 = vpop.f32.mrb[0].mxu0
        %1336 = vmatprep.mubr.bf16.mxu0 0
        %1337 = vmatmul.mubr.bf16.gmra.mrb[0].mxu0 %v595
        %v1338 = vpop.f32.mrb[0].mxu0
        %v1339 = vadd.f32 0.0, %v1338
        %v1340 = vpop.f32.mrb[0].mxu0
        %v1341 = vpop.f32.mrb[0].mxu0
        %v1342 = vadd.f32 0.0, %v1341
        %v1343 = vpop.f32.mrb[0].mxu0
        %1344 = vmatprep.mubr.bf16.mxu0 0
        %1345 = vmatmul.mubr.bf16.gmra.mrb[0].mxu0 %v1251
        %v1346 = vpop.f32.mrb[0].mxu0
        %v1347 = vadd.f32 0.0, %v1346
        %v1348 = vpop.f32.mrb[0].mxu0
        %v1349 = vpop.f32.mrb[0].mxu0
        %v1350 = vadd.f32 0.0, %v1349
        %v1351 = vpop.f32.mrb[0].mxu0
        %1352 = vdwg.mxu0
        %v1353 = vadd.f32 %v1205, %v1291
        %v1354 = vadd.f32 %v1206, %v1294
        %v1355 = vadd.f32 %v1207, %v1299
        %v1356 = vadd.f32 %v1208, %v1302
        %v1357 = vadd.f32 %v1209, %v1307
        %v1358 = vadd.f32 %v1210, %v1310
        %v1359 = vadd.f32 %v1211, %v1315
        %v1360 = vadd.f32 %v1212, %v1318
        %v1361 = vadd.f32 %v1213, %v1323
        %v1362 = vadd.f32 %v1214, %v1326
        %v1363 = vadd.f32 %v1215, %v1331
        %v1364 = vadd.f32 %v1216, %v1334
        %v1365 = vadd.f32 %v1217, %v1339
        %v1366 = vadd.f32 %v1218, %v1342
        %v1367 = vadd.f32 %v1219, %v1347
        %v1368 = vadd.f32 %v1220, %v1350
        %v1370 = vrot.slane %v344, 5
        %v1371 = vrot.slane %v1370, 4
        %v1372 = vrot.slane %v345, 5
        %v1373 = vsel %vm872, %v1371, %v1372
        %v1374 = vrot.slane %v1372, 4
        %v1375 = vrot.slane %v346, 5
        %v1376 = vsel %vm872, %v1374, %v1375
        %s1377 = scalar_lea.vmem [#allocation9], 10
        %v1378 = vld [vmem:[%s1377] sm:$0x3]
        %v1379 = vunpack.c.l.b16 %v1373
        %v1380 = vunpack.c.l.b16 %v1376
        %v1381 = vpack.c.b16 %v1380, %v1379
        %v1383 = vsel %vm572, %v1381, 0
        %v1386 = vsel %vm597, %v1378, 0
        %1388 = vmatprep.subr.bf16.mxu0 0
        %1389 = vmatpush1.bf16.msra.mxu0 %v1386
        %1390 = vmatprep.subr.bf16.mxu0 0
        %1391 = vmatpush1.bf16.msra.mxu0 0
        %1392 = vmatprep.subr.bf16.mxu0 0
        %1393 = vmatpush1.bf16.msra.mxu0 0
        %1394 = vmatprep.subr.bf16.mxu0 0
        %1395 = vmatpush1.bf16.msra.mxu0 0
        %1396 = vmatprep.subr.bf16.mxu0 0
        %1397 = vmatpush1.bf16.msra.mxu0 0
        %1398 = vmatprep.subr.bf16.mxu0 0
        %1399 = vmatpush1.bf16.msra.mxu0 0
        %1400 = vmatprep.subr.bf16.mxu0 0
        %1401 = vmatpush1.bf16.msra.mxu0 0
        %1402 = vmatprep.subr.bf16.mxu0 0
        %1403 = vmatpush1.bf16.msra.mxu0 0
        %1404 = vmatprep.subr.bf16.mxu0 0
        %1405 = vmatpush1.bf16.msra.mxu0 0
        %1406 = vmatprep.subr.bf16.mxu0 0
        %1407 = vmatpush1.bf16.msra.mxu0 0
        %1408 = vmatprep.subr.bf16.mxu0 0
        %1409 = vmatpush1.bf16.msra.mxu0 0
        %1410 = vmatprep.subr.bf16.mxu0 0
        %1411 = vmatpush1.bf16.msra.mxu0 0
        %1412 = vmatprep.subr.bf16.mxu0 0
        %1413 = vmatpush1.bf16.msra.mxu0 0
        %1414 = vmatprep.subr.bf16.mxu0 0
        %1415 = vmatpush1.bf16.msra.mxu0 0
        %1416 = vmatprep.subr.bf16.mxu0 0
        %1417 = vmatpush1.bf16.msra.mxu0 0
        %1418 = vmatprep.subr.bf16.mxu0 0
        %1419 = vmatpush1.bf16.msra.mxu0 0
        %1420 = vmatprep.mubr.bf16.mxu0 0
        %1421 = vmatmul.mubr.bf16.gmra.mrb[0].mxu0 %v959
        %v1422 = vpop.f32.mrb[0].mxu0
        %v1423 = vadd.f32 0.0, %v1422
        %v1424 = vpop.f32.mrb[0].mxu0
        %v1425 = vpop.f32.mrb[0].mxu0
        %v1426 = vadd.f32 0.0, %v1425
        %v1427 = vpop.f32.mrb[0].mxu0
        %1428 = vmatprep.mubr.bf16.mxu0 0
        %1429 = vmatmul.mubr.bf16.gmra.mrb[0].mxu0 %v962
        %v1430 = vpop.f32.mrb[0].mxu0
        %v1431 = vadd.f32 0.0, %v1430
        %v1432 = vpop.f32.mrb[0].mxu0
        %v1433 = vpop.f32.mrb[0].mxu0
        %v1434 = vadd.f32 0.0, %v1433
        %v1435 = vpop.f32.mrb[0].mxu0
        %1436 = vmatprep.mubr.bf16.mxu0 0
        %1437 = vmatmul.mubr.bf16.gmra.mrb[0].mxu0 %v965
        %v1438 = vpop.f32.mrb[0].mxu0
        %v1439 = vadd.f32 0.0, %v1438
        %v1440 = vpop.f32.mrb[0].mxu0
        %v1441 = vpop.f32.mrb[0].mxu0
        %v1442 = vadd.f32 0.0, %v1441
        %v1443 = vpop.f32.mrb[0].mxu0
        %1444 = vmatprep.mubr.bf16.mxu0 0
        %1445 = vmatmul.mubr.bf16.gmra.mrb[0].mxu0 %v968
        %v1446 = vpop.f32.mrb[0].mxu0
        %v1447 = vadd.f32 0.0, %v1446
        %v1448 = vpop.f32.mrb[0].mxu0
        %v1449 = vpop.f32.mrb[0].mxu0
        %v1450 = vadd.f32 0.0, %v1449
        %v1451 = vpop.f32.mrb[0].mxu0
        %1452 = vmatprep.mubr.bf16.mxu0 0
        %1453 = vmatmul.mubr.bf16.gmra.mrb[0].mxu0 %v971
        %v1454 = vpop.f32.mrb[0].mxu0
        %v1455 = vadd.f32 0.0, %v1454
        %v1456 = vpop.f32.mrb[0].mxu0
        %v1457 = vpop.f32.mrb[0].mxu0
        %v1458 = vadd.f32 0.0, %v1457
        %v1459 = vpop.f32.mrb[0].mxu0
        %1460 = vmatprep.mubr.bf16.mxu0 0
        %1461 = vmatmul.mubr.bf16.gmra.mrb[0].mxu0 %v974
        %v1462 = vpop.f32.mrb[0].mxu0
        %v1463 = vadd.f32 0.0, %v1462
        %v1464 = vpop.f32.mrb[0].mxu0
        %v1465 = vpop.f32.mrb[0].mxu0
        %v1466 = vadd.f32 0.0, %v1465
        %v1467 = vpop.f32.mrb[0].mxu0
        %1468 = vmatprep.mubr.bf16.mxu0 0
        %1469 = vmatmul.mubr.bf16.gmra.mrb[0].mxu0 %v977
        %v1470 = vpop.f32.mrb[0].mxu0
        %v1471 = vadd.f32 0.0, %v1470
        %v1472 = vpop.f32.mrb[0].mxu0
        %v1473 = vpop.f32.mrb[0].mxu0
        %v1474 = vadd.f32 0.0, %v1473
        %v1475 = vpop.f32.mrb[0].mxu0
        %1476 = vmatprep.mubr.bf16.mxu0 0
        %1477 = vmatmul.mubr.bf16.gmra.mrb[0].mxu0 %v1383
        %v1478 = vpop.f32.mrb[0].mxu0
        %v1479 = vadd.f32 0.0, %v1478
        %v1480 = vpop.f32.mrb[0].mxu0
        %v1481 = vpop.f32.mrb[0].mxu0
        %v1482 = vadd.f32 0.0, %v1481
        %v1483 = vpop.f32.mrb[0].mxu0
        %1484 = vdwg.mxu0
        %v1485 = vadd.f32 %v1353, %v1423
        %v1486 = vadd.f32 %v1354, %v1426
        %v1487 = vadd.f32 %v1355, %v1431
        %v1488 = vadd.f32 %v1356, %v1434
        %v1489 = vadd.f32 %v1357, %v1439
        %v1490 = vadd.f32 %v1358, %v1442
        %v1491 = vadd.f32 %v1359, %v1447
        %v1492 = vadd.f32 %v1360, %v1450
        %v1493 = vadd.f32 %v1361, %v1455
        %v1494 = vadd.f32 %v1362, %v1458
        %v1495 = vadd.f32 %v1363, %v1463
        %v1496 = vadd.f32 %v1364, %v1466
        %v1497 = vadd.f32 %v1365, %v1471
        %v1498 = vadd.f32 %v1366, %v1474
        %v1499 = vadd.f32 %v1367, %v1479
        %v1500 = vadd.f32 %v1368, %v1482
        %s1501 = scalar_lea.vmem [#allocation9], 12
        %v1502 = vld [vmem:[%s1501] sm:$0x3]
        %v1505 = vunpack.c.l.b16 %v347
        %v1506 = vunpack.c.l.b16 %v348
        %v1507 = vpack.c.b16 %v1506, %v1505
        %v1509 = vsel %vm572, %v1507, 0
        %v1512 = vsel %vm597, %v1502, 0
        %1514 = vmatprep.subr.bf16.mxu0 0
        %1515 = vmatpush1.bf16.msra.mxu0 %v1512
        %1516 = vmatprep.subr.bf16.mxu0 0
        %1517 = vmatpush1.bf16.msra.mxu0 0
        %1518 = vmatprep.subr.bf16.mxu0 0
        %1519 = vmatpush1.bf16.msra.mxu0 0
        %1520 = vmatprep.subr.bf16.mxu0 0
        %1521 = vmatpush1.bf16.msra.mxu0 0
        %1522 = vmatprep.subr.bf16.mxu0 0
        %1523 = vmatpush1.bf16.msra.mxu0 0
        %1524 = vmatprep.subr.bf16.mxu0 0
        %1525 = vmatpush1.bf16.msra.mxu0 0
        %1526 = vmatprep.subr.bf16.mxu0 0
        %1527 = vmatpush1.bf16.msra.mxu0 0
        %1528 = vmatprep.subr.bf16.mxu0 0
        %1529 = vmatpush1.bf16.msra.mxu0 0
        %1530 = vmatprep.subr.bf16.mxu0 0
        %1531 = vmatpush1.bf16.msra.mxu0 0
        %1532 = vmatprep.subr.bf16.mxu0 0
        %1533 = vmatpush1.bf16.msra.mxu0 0
        %1534 = vmatprep.subr.bf16.mxu0 0
        %1535 = vmatpush1.bf16.msra.mxu0 0
        %1536 = vmatprep.subr.bf16.mxu0 0
        %1537 = vmatpush1.bf16.msra.mxu0 0
        %1538 = vmatprep.subr.bf16.mxu0 0
        %1539 = vmatpush1.bf16.msra.mxu0 0
        %1540 = vmatprep.subr.bf16.mxu0 0
        %1541 = vmatpush1.bf16.msra.mxu0 0
        %1542 = vmatprep.subr.bf16.mxu0 0
        %1543 = vmatpush1.bf16.msra.mxu0 0
        %1544 = vmatprep.subr.bf16.mxu0 0
        %1545 = vmatpush1.bf16.msra.mxu0 0
        %1546 = vmatprep.mubr.bf16.mxu0 0
        %1547 = vmatmul.mubr.bf16.gmra.mrb[0].mxu0 %v745
        %v1548 = vpop.f32.mrb[0].mxu0
        %v1549 = vadd.f32 0.0, %v1548
        %v1550 = vpop.f32.mrb[0].mxu0
        %v1551 = vpop.f32.mrb[0].mxu0
        %v1552 = vadd.f32 0.0, %v1551
        %v1553 = vpop.f32.mrb[0].mxu0
        %1554 = vmatprep.mubr.bf16.mxu0 0
        %1555 = vmatmul.mubr.bf16.gmra.mrb[0].mxu0 %v748
        %v1556 = vpop.f32.mrb[0].mxu0
        %v1557 = vadd.f32 0.0, %v1556
        %v1558 = vpop.f32.mrb[0].mxu0
        %v1559 = vpop.f32.mrb[0].mxu0
        %v1560 = vadd.f32 0.0, %v1559
        %v1561 = vpop.f32.mrb[0].mxu0
        %1562 = vmatprep.mubr.bf16.mxu0 0
        %1563 = vmatmul.mubr.bf16.gmra.mrb[0].mxu0 %v751
        %v1564 = vpop.f32.mrb[0].mxu0
        %v1565 = vadd.f32 0.0, %v1564
        %v1566 = vpop.f32.mrb[0].mxu0
        %v1567 = vpop.f32.mrb[0].mxu0
        %v1568 = vadd.f32 0.0, %v1567
        %v1569 = vpop.f32.mrb[0].mxu0
        %1570 = vmatprep.mubr.bf16.mxu0 0
        %1571 = vmatmul.mubr.bf16.gmra.mrb[0].mxu0 %v754
        %v1572 = vpop.f32.mrb[0].mxu0
        %v1573 = vadd.f32 0.0, %v1572
        %v1574 = vpop.f32.mrb[0].mxu0
        %v1575 = vpop.f32.mrb[0].mxu0
        %v1576 = vadd.f32 0.0, %v1575
        %v1577 = vpop.f32.mrb[0].mxu0
        %1578 = vmatprep.mubr.bf16.mxu0 0
        %1579 = vmatmul.mubr.bf16.gmra.mrb[0].mxu0 %v757
        %v1580 = vpop.f32.mrb[0].mxu0
        %v1581 = vadd.f32 0.0, %v1580
        %v1582 = vpop.f32.mrb[0].mxu0
        %v1583 = vpop.f32.mrb[0].mxu0
        %v1584 = vadd.f32 0.0, %v1583
        %v1585 = vpop.f32.mrb[0].mxu0
        %1586 = vmatprep.mubr.bf16.mxu0 0
        %1587 = vmatmul.mubr.bf16.gmra.mrb[0].mxu0 %v760
        %v1588 = vpop.f32.mrb[0].mxu0
        %v1589 = vadd.f32 0.0, %v1588
        %v1590 = vpop.f32.mrb[0].mxu0
        %v1591 = vpop.f32.mrb[0].mxu0
        %v1592 = vadd.f32 0.0, %v1591
        %v1593 = vpop.f32.mrb[0].mxu0
        %1594 = vmatprep.mubr.bf16.mxu0 0
        %1595 = vmatmul.mubr.bf16.gmra.mrb[0].mxu0 %v1103
        %v1596 = vpop.f32.mrb[0].mxu0
        %v1597 = vadd.f32 0.0, %v1596
        %v1598 = vpop.f32.mrb[0].mxu0
        %v1599 = vpop.f32.mrb[0].mxu0
        %v1600 = vadd.f32 0.0, %v1599
        %v1601 = vpop.f32.mrb[0].mxu0
        %1602 = vmatprep.mubr.bf16.mxu0 0
        %1603 = vmatmul.mubr.bf16.gmra.mrb[0].mxu0 %v1509
        %v1604 = vpop.f32.mrb[0].mxu0
        %v1605 = vadd.f32 0.0, %v1604
        %v1606 = vpop.f32.mrb[0].mxu0
        %v1607 = vpop.f32.mrb[0].mxu0
        %v1608 = vadd.f32 0.0, %v1607
        %v1609 = vpop.f32.mrb[0].mxu0
        %1610 = vdwg.mxu0
        %v1611 = vadd.f32 %v1485, %v1549
        %v1612 = vadd.f32 %v1486, %v1552
        %v1613 = vadd.f32 %v1487, %v1557
        %v1614 = vadd.f32 %v1488, %v1560
        %v1615 = vadd.f32 %v1489, %v1565
        %v1616 = vadd.f32 %v1490, %v1568
        %v1617 = vadd.f32 %v1491, %v1573
        %v1618 = vadd.f32 %v1492, %v1576
        %v1619 = vadd.f32 %v1493, %v1581
        %v1620 = vadd.f32 %v1494, %v1584
        %v1621 = vadd.f32 %v1495, %v1589
        %v1622 = vadd.f32 %v1496, %v1592
        %v1623 = vadd.f32 %v1497, %v1597
        %v1624 = vadd.f32 %v1498, %v1600
        %v1625 = vadd.f32 %v1499, %v1605
        %v1626 = vadd.f32 %v1500, %v1608
        %v1628 = vshrl.u32 %v347, 16
        %v1630 = vrot.slane %v1628, 4
        %v1631 = vshll.u32 %v347, 16
        %v1633 = vrot.slane %v1631, 5
        %v1634 = vor.u32 %v1630, %v1633
        %v1635 = vrot.slane %v1634, 4
        %v1637 = vshll.u32 %v348, 16
        %v1639 = vrot.slane %v1637, 5
        %v1640 = vsel %vm353, %v1635, %v1639
        %v1641 = vshrl.u32 %v348, 16
        %v1643 = vrot.slane %v1641, 4
        %v1644 = vor.u32 %v1643, %v1639
        %v1645 = vrot.slane %v1644, 4
        %v1647 = vshll.u32 %v349, 16
        %v1649 = vrot.slane %v1647, 5
        %v1650 = vsel %vm353, %v1645, %v1649
        %s1651 = scalar_lea.vmem [#allocation9], 14
        %v1652 = vld [vmem:[%s1651] sm:$0x3]
        %v1653 = vunpack.c.l.b16 %v1640
        %v1654 = vunpack.c.l.b16 %v1650
        %v1655 = vpack.c.b16 %v1654, %v1653
        %v1657 = vsel %vm572, %v1655, 0
        %v1660 = vsel %vm597, %v1652, 0
        %1662 = vmatprep.subr.bf16.mxu0 0
        %1663 = vmatpush1.bf16.msra.mxu0 %v1660
        %1664 = vmatprep.subr.bf16.mxu0 0
        %1665 = vmatpush1.bf16.msra.mxu0 0
        %1666 = vmatprep.subr.bf16.mxu0 0
        %1667 = vmatpush1.bf16.msra.mxu0 0
        %1668 = vmatprep.subr.bf16.mxu0 0
        %1669 = vmatpush1.bf16.msra.mxu0 0
        %1670 = vmatprep.subr.bf16.mxu0 0
        %1671 = vmatpush1.bf16.msra.mxu0 0
        %1672 = vmatprep.subr.bf16.mxu0 0
        %1673 = vmatpush1.bf16.msra.mxu0 0
        %1674 = vmatprep.subr.bf16.mxu0 0
        %1675 = vmatpush1.bf16.msra.mxu0 0
        %1676 = vmatprep.subr.bf16.mxu0 0
        %1677 = vmatpush1.bf16.msra.mxu0 0
        %1678 = vmatprep.subr.bf16.mxu0 0
        %1679 = vmatpush1.bf16.msra.mxu0 0
        %1680 = vmatprep.subr.bf16.mxu0 0
        %1681 = vmatpush1.bf16.msra.mxu0 0
        %1682 = vmatprep.subr.bf16.mxu0 0
        %1683 = vmatpush1.bf16.msra.mxu0 0
        %1684 = vmatprep.subr.bf16.mxu0 0
        %1685 = vmatpush1.bf16.msra.mxu0 0
        %1686 = vmatprep.subr.bf16.mxu0 0
        %1687 = vmatpush1.bf16.msra.mxu0 0
        %1688 = vmatprep.subr.bf16.mxu0 0
        %1689 = vmatpush1.bf16.msra.mxu0 0
        %1690 = vmatprep.subr.bf16.mxu0 0
        %1691 = vmatpush1.bf16.msra.mxu0 0
        %1692 = vmatprep.subr.bf16.mxu0 0
        %1693 = vmatpush1.bf16.msra.mxu0 0
        %1694 = vmatprep.mubr.bf16.mxu0 0
        %1695 = vmatmul.mubr.bf16.gmra.mrb[0].mxu0 %v580
        %v1696 = vpop.f32.mrb[0].mxu0
        %v1697 = vadd.f32 0.0, %v1696
        %v1698 = vpop.f32.mrb[0].mxu0
        %v1699 = vpop.f32.mrb[0].mxu0
        %v1700 = vadd.f32 0.0, %v1699
        %v1701 = vpop.f32.mrb[0].mxu0
        %1702 = vmatprep.mubr.bf16.mxu0 0
        %1703 = vmatmul.mubr.bf16.gmra.mrb[0].mxu0 %v583
        %v1704 = vpop.f32.mrb[0].mxu0
        %v1705 = vadd.f32 0.0, %v1704
        %v1706 = vpop.f32.mrb[0].mxu0
        %v1707 = vpop.f32.mrb[0].mxu0
        %v1708 = vadd.f32 0.0, %v1707
        %v1709 = vpop.f32.mrb[0].mxu0
        %1710 = vmatprep.mubr.bf16.mxu0 0
        %1711 = vmatmul.mubr.bf16.gmra.mrb[0].mxu0 %v586
        %v1712 = vpop.f32.mrb[0].mxu0
        %v1713 = vadd.f32 0.0, %v1712
        %v1714 = vpop.f32.mrb[0].mxu0
        %v1715 = vpop.f32.mrb[0].mxu0
        %v1716 = vadd.f32 0.0, %v1715
        %v1717 = vpop.f32.mrb[0].mxu0
        %1718 = vmatprep.mubr.bf16.mxu0 0
        %1719 = vmatmul.mubr.bf16.gmra.mrb[0].mxu0 %v589
        %v1720 = vpop.f32.mrb[0].mxu0
        %v1721 = vadd.f32 0.0, %v1720
        %v1722 = vpop.f32.mrb[0].mxu0
        %v1723 = vpop.f32.mrb[0].mxu0
        %v1724 = vadd.f32 0.0, %v1723
        %v1725 = vpop.f32.mrb[0].mxu0
        %1726 = vmatprep.mubr.bf16.mxu0 0
        %1727 = vmatmul.mubr.bf16.gmra.mrb[0].mxu0 %v592
        %v1728 = vpop.f32.mrb[0].mxu0
        %v1729 = vadd.f32 0.0, %v1728
        %v1730 = vpop.f32.mrb[0].mxu0
        %v1731 = vpop.f32.mrb[0].mxu0
        %v1732 = vadd.f32 0.0, %v1731
        %v1733 = vpop.f32.mrb[0].mxu0
        %1734 = vmatprep.mubr.bf16.mxu0 0
        %1735 = vmatmul.mubr.bf16.gmra.mrb[0].mxu0 %v595
        %v1736 = vpop.f32.mrb[0].mxu0
        %v1737 = vadd.f32 0.0, %v1736
        %v1738 = vpop.f32.mrb[0].mxu0
        %v1739 = vpop.f32.mrb[0].mxu0
        %v1740 = vadd.f32 0.0, %v1739
        %v1741 = vpop.f32.mrb[0].mxu0
        %1742 = vmatprep.mubr.bf16.mxu0 0
        %1743 = vmatmul.mubr.bf16.gmra.mrb[0].mxu0 %v1251
        %v1744 = vpop.f32.mrb[0].mxu0
        %v1745 = vadd.f32 0.0, %v1744
        %v1746 = vpop.f32.mrb[0].mxu0
        %v1747 = vpop.f32.mrb[0].mxu0
        %v1748 = vadd.f32 0.0, %v1747
        %v1749 = vpop.f32.mrb[0].mxu0
        %1750 = vmatprep.mubr.bf16.mxu0 0
        %1751 = vmatmul.mubr.bf16.gmra.mrb[0].mxu0 %v1657
        %v1752 = vpop.f32.mrb[0].mxu0
        %v1753 = vadd.f32 0.0, %v1752
        %v1754 = vpop.f32.mrb[0].mxu0
        %v1755 = vpop.f32.mrb[0].mxu0
        %v1756 = vadd.f32 0.0, %v1755
        %v1757 = vpop.f32.mrb[0].mxu0
        %1758 = vdwg.mxu0
        %v1759 = vadd.f32 %v1611, %v1697
        %v1760 = vadd.f32 %v1612, %v1700
        %v1761 = vadd.f32 %v1613, %v1705
        %v1762 = vadd.f32 %v1614, %v1708
        %v1763 = vadd.f32 %v1615, %v1713
        %v1764 = vadd.f32 %v1616, %v1716
        %v1765 = vadd.f32 %v1617, %v1721
        %v1766 = vadd.f32 %v1618, %v1724
        %v1767 = vadd.f32 %v1619, %v1729
        %v1768 = vadd.f32 %v1620, %v1732
        %v1769 = vadd.f32 %v1621, %v1737
        %v1770 = vadd.f32 %v1622, %v1740
        %v1771 = vadd.f32 %v1623, %v1745
        %v1772 = vadd.f32 %v1624, %v1748
        %v1773 = vadd.f32 %v1625, %v1753
        %v1774 = vadd.f32 %v1626, %v1756
        %v1776 = vrot.slane %v347, 5
        %v1777 = vrot.slane %v1776, 4
        %v1778 = vrot.slane %v348, 5
        %v1779 = vsel %vm872, %v1777, %v1778
        %v1780 = vrot.slane %v1778, 4
        %v1781 = vrot.slane %v349, 5
        %v1782 = vsel %vm872, %v1780, %v1781
        %s1783 = scalar_lea.vmem [#allocation9], 16
        %v1784 = vld [vmem:[%s1783] sm:$0x3]
        %v1785 = vunpack.c.l.b16 %v1779
        %v1786 = vunpack.c.l.b16 %v1782
        %v1787 = vpack.c.b16 %v1786, %v1785
        %v1789 = vsel %vm572, %v1787, 0
        %v1792 = vsel %vm597, %v1784, 0
        %1794 = vmatprep.subr.bf16.mxu0 0
        %1795 = vmatpush1.bf16.msra.mxu0 %v1792
        %1796 = vmatprep.subr.bf16.mxu0 0
        %1797 = vmatpush1.bf16.msra.mxu0 0
        %1798 = vmatprep.subr.bf16.mxu0 0
        %1799 = vmatpush1.bf16.msra.mxu0 0
        %1800 = vmatprep.subr.bf16.mxu0 0
        %1801 = vmatpush1.bf16.msra.mxu0 0
        %1802 = vmatprep.subr.bf16.mxu0 0
        %1803 = vmatpush1.bf16.msra.mxu0 0
        %1804 = vmatprep.subr.bf16.mxu0 0
        %1805 = vmatpush1.bf16.msra.mxu0 0
        %1806 = vmatprep.subr.bf16.mxu0 0
        %1807 = vmatpush1.bf16.msra.mxu0 0
        %1808 = vmatprep.subr.bf16.mxu0 0
        %1809 = vmatpush1.bf16.msra.mxu0 0
        %1810 = vmatprep.subr.bf16.mxu0 0
        %1811 = vmatpush1.bf16.msra.mxu0 0
        %1812 = vmatprep.subr.bf16.mxu0 0
        %1813 = vmatpush1.bf16.msra.mxu0 0
        %1814 = vmatprep.subr.bf16.mxu0 0
        %1815 = vmatpush1.bf16.msra.mxu0 0
        %1816 = vmatprep.subr.bf16.mxu0 0
        %1817 = vmatpush1.bf16.msra.mxu0 0
        %1818 = vmatprep.subr.bf16.mxu0 0
        %1819 = vmatpush1.bf16.msra.mxu0 0
        %1820 = vmatprep.subr.bf16.mxu0 0
        %1821 = vmatpush1.bf16.msra.mxu0 0
        %1822 = vmatprep.subr.bf16.mxu0 0
        %1823 = vmatpush1.bf16.msra.mxu0 0
        %1824 = vmatprep.subr.bf16.mxu0 0
        %1825 = vmatpush1.bf16.msra.mxu0 0
        %1826 = vmatprep.mubr.bf16.mxu0 0
        %1827 = vmatmul.mubr.bf16.gmra.mrb[0].mxu0 %v962
        %v1828 = vpop.f32.mrb[0].mxu0
        %v1829 = vadd.f32 0.0, %v1828
        %v1830 = vpop.f32.mrb[0].mxu0
        %v1831 = vpop.f32.mrb[0].mxu0
        %v1832 = vadd.f32 0.0, %v1831
        %v1833 = vpop.f32.mrb[0].mxu0
        %1834 = vmatprep.mubr.bf16.mxu0 0
        %1835 = vmatmul.mubr.bf16.gmra.mrb[0].mxu0 %v965
        %v1836 = vpop.f32.mrb[0].mxu0
        %v1837 = vadd.f32 0.0, %v1836
        %v1838 = vpop.f32.mrb[0].mxu0
        %v1839 = vpop.f32.mrb[0].mxu0
        %v1840 = vadd.f32 0.0, %v1839
        %v1841 = vpop.f32.mrb[0].mxu0
        %1842 = vmatprep.mubr.bf16.mxu0 0
        %1843 = vmatmul.mubr.bf16.gmra.mrb[0].mxu0 %v968
        %v1844 = vpop.f32.mrb[0].mxu0
        %v1845 = vadd.f32 0.0, %v1844
        %v1846 = vpop.f32.mrb[0].mxu0
        %v1847 = vpop.f32.mrb[0].mxu0
        %v1848 = vadd.f32 0.0, %v1847
        %v1849 = vpop.f32.mrb[0].mxu0
        %1850 = vmatprep.mubr.bf16.mxu0 0
        %1851 = vmatmul.mubr.bf16.gmra.mrb[0].mxu0 %v971
        %v1852 = vpop.f32.mrb[0].mxu0
        %v1853 = vadd.f32 0.0, %v1852
        %v1854 = vpop.f32.mrb[0].mxu0
        %v1855 = vpop.f32.mrb[0].mxu0
        %v1856 = vadd.f32 0.0, %v1855
        %v1857 = vpop.f32.mrb[0].mxu0
        %1858 = vmatprep.mubr.bf16.mxu0 0
        %1859 = vmatmul.mubr.bf16.gmra.mrb[0].mxu0 %v974
        %v1860 = vpop.f32.mrb[0].mxu0
        %v1861 = vadd.f32 0.0, %v1860
        %v1862 = vpop.f32.mrb[0].mxu0
        %v1863 = vpop.f32.mrb[0].mxu0
        %v1864 = vadd.f32 0.0, %v1863
        %v1865 = vpop.f32.mrb[0].mxu0
        %1866 = vmatprep.mubr.bf16.mxu0 0
        %1867 = vmatmul.mubr.bf16.gmra.mrb[0].mxu0 %v977
        %v1868 = vpop.f32.mrb[0].mxu0
        %v1869 = vadd.f32 0.0, %v1868
        %v1870 = vpop.f32.mrb[0].mxu0
        %v1871 = vpop.f32.mrb[0].mxu0
        %v1872 = vadd.f32 0.0, %v1871
        %v1873 = vpop.f32.mrb[0].mxu0
        %1874 = vmatprep.mubr.bf16.mxu0 0
        %1875 = vmatmul.mubr.bf16.gmra.mrb[0].mxu0 %v1383
        %v1876 = vpop.f32.mrb[0].mxu0
        %v1877 = vadd.f32 0.0, %v1876
        %v1878 = vpop.f32.mrb[0].mxu0
        %v1879 = vpop.f32.mrb[0].mxu0
        %v1880 = vadd.f32 0.0, %v1879
        %v1881 = vpop.f32.mrb[0].mxu0
        %1882 = vmatprep.mubr.bf16.mxu0 0
        %1883 = vmatmul.mubr.bf16.gmra.mrb[0].mxu0 %v1789
        %v1884 = vpop.f32.mrb[0].mxu0
        %v1885 = vadd.f32 0.0, %v1884
        %v1886 = vpop.f32.mrb[0].mxu0
        %v1887 = vpop.f32.mrb[0].mxu0
        %v1888 = vadd.f32 0.0, %v1887
        %v1889 = vpop.f32.mrb[0].mxu0
        %1890 = vdwg.mxu0
        %v1891 = vadd.f32 %v1759, %v1829
        %v1892 = vadd.f32 %v1760, %v1832
        %v1893 = vadd.f32 %v1761, %v1837
        %v1894 = vadd.f32 %v1762, %v1840
        %v1895 = vadd.f32 %v1763, %v1845
        %v1896 = vadd.f32 %v1764, %v1848
        %v1897 = vadd.f32 %v1765, %v1853
        %v1898 = vadd.f32 %v1766, %v1856
        %v1899 = vadd.f32 %v1767, %v1861
        %v1900 = vadd.f32 %v1768, %v1864
        %v1901 = vadd.f32 %v1769, %v1869
        %v1902 = vadd.f32 %v1770, %v1872
        %v1903 = vadd.f32 %v1771, %v1877
        %v1904 = vadd.f32 %v1772, %v1880
        %v1905 = vadd.f32 %v1773, %v1885
        %v1906 = vadd.f32 %v1774, %v1888
        %v1907 = vld [vmem:[#allocation11] sm:$0x1]
        %v1909 = vlaneseq
        %v1910 = vshrl.u32 %v1909, 7
        %v1911 = vsub.s32 0, %v1910
        %v1912 = vrot.slane %v1907, %v1911
        %v1914 = vadd.f32 %v1891, %v1912
        %v1915 = vadd.f32 %v1892, %v1912
        %v1916 = vadd.f32 %v1893, %v1912
        %v1917 = vadd.f32 %v1894, %v1912
        %v1918 = vadd.f32 %v1895, %v1912
        %v1919 = vadd.f32 %v1896, %v1912
        %v1920 = vadd.f32 %v1897, %v1912
        %v1921 = vadd.f32 %v1898, %v1912
        %v1922 = vadd.f32 %v1899, %v1912
        %v1923 = vadd.f32 %v1900, %v1912
        %v1924 = vadd.f32 %v1901, %v1912
        %v1925 = vadd.f32 %v1902, %v1912
        %v1926 = vadd.f32 %v1903, %v1912
        %v1927 = vadd.f32 %v1904, %v1912
        %v1928 = vadd.f32 %v1905, %v1912
        %v1929 = vadd.f32 %v1906, %v1912
        %v1930 = vmax.f32 %v1914, 0.0
        %v1931 = vmax.f32 %v1915, 0.0
        %v1932 = vmax.f32 %v1916, 0.0
        %v1933 = vmax.f32 %v1917, 0.0
        %v1934 = vmax.f32 %v1918, 0.0
        %v1935 = vmax.f32 %v1919, 0.0
        %v1936 = vmax.f32 %v1920, 0.0
        %v1937 = vmax.f32 %v1921, 0.0
        %v1938 = vmax.f32 %v1922, 0.0
        %v1939 = vmax.f32 %v1923, 0.0
        %v1940 = vmax.f32 %v1924, 0.0
        %v1941 = vmax.f32 %v1925, 0.0
        %v1942 = vmax.f32 %v1926, 0.0
        %v1943 = vmax.f32 %v1927, 0.0
        %v1944 = vmax.f32 %v1928, 0.0
        %v1945 = vmax.f32 %v1929, 0.0
        // Predicated region
        $region65: #{conv_block.1} parent=39 // pred_check
          %p1946 = pneg %p312
        $region66: #{conv_block.1} parent=39 // pred_check_branch
          %1948 = sbr.rel (%p1946) target = $region68
        $region67: #{conv_block.1} parent=39 // pred_region
          %v1949 = vld [vmem:[#allocation2] sm:$0x1]
          %v1950 = vadd.f32 %v1930, %v1931
          %v1951 = vadd.f32 %v1950, %v1932
          %v1952 = vadd.f32 %v1951, %v1933
          %v1953 = vadd.f32 %v1952, %v1934
          %v1954 = vadd.f32 %v1953, %v1935
          %v1955 = vadd.f32 %v1954, %v1936
          %v1956 = vadd.f32 %v1955, %v1937
          %v1957 = vadd.f32 %v1956, %v1938
          %v1958 = vadd.f32 %v1957, %v1939
          %v1959 = vadd.f32 %v1958, %v1940
          %v1960 = vadd.f32 %v1959, %v1941
          %v1961 = vadd.f32 %v1960, %v1942
          %v1962 = vadd.f32 %v1961, %v1943
          %v1963 = vadd.f32 %v1962, %v1944
          %v1964 = vadd.f32 %v1963, %v1945
          %v1965 = vrot.slane %v1964, 4
          %v1966 = vadd.f32 %v1964, %v1965
          %v1967 = vrot.slane %v1966, 2
          %v1968 = vadd.f32 %v1966, %v1967
          %v1969 = vrot.slane %v1968, 1
          %v1970 = vadd.f32 %v1968, %v1969
          %v1971 = vadd.f32 %v1949, %v1970
          %1972 = vst [vmem:[#allocation2] sm:$0x1] %v1971
          %v1973 = vld [vmem:[#allocation3] sm:$0x1]
          %v1974 = vmul.f32 %v1930, %v1930
          %v1975 = vmul.f32 %v1931, %v1931
          %v1976 = vmul.f32 %v1932, %v1932
          %v1977 = vmul.f32 %v1933, %v1933
          %v1978 = vmul.f32 %v1934, %v1934
          %v1979 = vmul.f32 %v1935, %v1935
          %v1980 = vmul.f32 %v1936, %v1936
          %v1981 = vmul.f32 %v1937, %v1937
          %v1982 = vmul.f32 %v1938, %v1938
          %v1983 = vmul.f32 %v1939, %v1939
          %v1984 = vmul.f32 %v1940, %v1940
          %v1985 = vmul.f32 %v1941, %v1941
          %v1986 = vmul.f32 %v1942, %v1942
          %v1987 = vmul.f32 %v1943, %v1943
          %v1988 = vmul.f32 %v1944, %v1944
          %v1989 = vmul.f32 %v1945, %v1945
          %v1990 = vadd.f32 %v1974, %v1975
          %v1991 = vadd.f32 %v1990, %v1976
          %v1992 = vadd.f32 %v1991, %v1977
          %v1993 = vadd.f32 %v1992, %v1978
          %v1994 = vadd.f32 %v1993, %v1979
          %v1995 = vadd.f32 %v1994, %v1980
          %v1996 = vadd.f32 %v1995, %v1981
          %v1997 = vadd.f32 %v1996, %v1982
          %v1998 = vadd.f32 %v1997, %v1983
          %v1999 = vadd.f32 %v1998, %v1984
          %v2000 = vadd.f32 %v1999, %v1985
          %v2001 = vadd.f32 %v2000, %v1986
          %v2002 = vadd.f32 %v2001, %v1987
          %v2003 = vadd.f32 %v2002, %v1988
          %v2004 = vadd.f32 %v2003, %v1989
          %v2005 = vrot.slane %v2004, 4
          %v2006 = vadd.f32 %v2004, %v2005
          %v2007 = vrot.slane %v2006, 2
          %v2008 = vadd.f32 %v2006, %v2007
          %v2009 = vrot.slane %v2008, 1
          %v2010 = vadd.f32 %v2008, %v2009
          %v2011 = vadd.f32 %v1973, %v2010
          %2012 = vst [vmem:[#allocation3] sm:$0x1] %v2011
        $region68: #{conv_block.1} parent=39 // pred_fallthru
          _
        %p2013 = scmp.eq.s32.totalorder %s29, 3
        %p2014 = pnand %p312, %p2013
        %p2015 = pneg %p2014
        // Predicated region
        $region69: #{conv_block.1} parent=39 // pred_check
          _
        $region70: #{conv_block.1} parent=39 // pred_check_branch
          %2017 = sbr.rel (%p2014) target = $region72
        $region71: #{conv_block.1} parent=39 // pred_region
          %v2018 = vld [vmem:[#allocation2] sm:$0x1]
          %v2019 = vmul.f32 %v2018, 0.001953125
          %v2020 = vld [vmem:[#allocation3] sm:$0x1]
          %v2021 = vmul.f32 %v2020, 0.001953125
          %v2022 = vmul.f32 %v2019, %v2019
          %v2023 = vsub.f32 %v2021, %v2022
          %v2024 = vmax.f32 %v2023, 0.0
          %v2025 = vadd.f32 %v2024, 1e-05
          %v2026 = vrsqrt.pop %v2025
          %v2027 = vld [vmem:[#allocation12] sm:$0x1]
          %v2028 = vmul.f32 %v2027, %v2026
          %2029 = vst [vmem:[#allocation4] sm:$0x1] %v2028
          %v2030 = vld [vmem:[#allocation14] sm:$0x1]
          %v2031 = vmul.f32 %v2019, %v2028
          %v2032 = vsub.f32 %v2030, %v2031
          %2033 = vst [vmem:[#allocation5] sm:$0x1] %v2032
        $region72: #{conv_block.1} parent=39 // pred_fallthru
          _
        %p2034 = scmp.eq.s32.totalorder %s28, 1
        // Predicated region
        $region73: #{conv_block.1} parent=39 // pred_check
          %p2035 = pneg %p2034
        $region74: #{conv_block.1} parent=39 // pred_check_branch
          %2037 = sbr.rel (%p2035) target = $region76
        $region75: #{conv_block.1} parent=39 // pred_region
          %v2038 = vld [vmem:[#allocation4] sm:$0x1]
          %v2040 = vlaneseq
          %v2041 = vshrl.u32 %v2040, 7
          %v2042 = vsub.s32 0, %v2041
          %v2043 = vrot.slane %v2038, %v2042
          %v2045 = vmul.f32 %v1930, %v2043
          %v2046 = vmul.f32 %v1931, %v2043
          %v2047 = vmul.f32 %v1932, %v2043
          %v2048 = vmul.f32 %v1933, %v2043
          %v2049 = vmul.f32 %v1934, %v2043
          %v2050 = vmul.f32 %v1935, %v2043
          %v2051 = vmul.f32 %v1936, %v2043
          %v2052 = vmul.f32 %v1937, %v2043
          %v2053 = vmul.f32 %v1938, %v2043
          %v2054 = vmul.f32 %v1939, %v2043
          %v2055 = vmul.f32 %v1940, %v2043
          %v2056 = vmul.f32 %v1941, %v2043
          %v2057 = vmul.f32 %v1942, %v2043
          %v2058 = vmul.f32 %v1943, %v2043
          %v2059 = vmul.f32 %v1944, %v2043
          %v2060 = vmul.f32 %v1945, %v2043
          %v2061 = vld [vmem:[#allocation5] sm:$0x1]
          %v2063 = vlaneseq
          %v2064 = vshrl.u32 %v2063, 7
          %v2065 = vsub.s32 0, %v2064
          %v2066 = vrot.slane %v2061, %v2065
          %v2068 = vadd.f32 %v2045, %v2066
          %v2069 = vadd.f32 %v2046, %v2066
          %v2070 = vadd.f32 %v2047, %v2066
          %v2071 = vadd.f32 %v2048, %v2066
          %v2072 = vadd.f32 %v2049, %v2066
          %v2073 = vadd.f32 %v2050, %v2066
          %v2074 = vadd.f32 %v2051, %v2066
          %v2075 = vadd.f32 %v2052, %v2066
          %v2076 = vadd.f32 %v2053, %v2066
          %v2077 = vadd.f32 %v2054, %v2066
          %v2078 = vadd.f32 %v2055, %v2066
          %v2079 = vadd.f32 %v2056, %v2066
          %v2080 = vadd.f32 %v2057, %v2066
          %v2081 = vadd.f32 %v2058, %v2066
          %v2082 = vadd.f32 %v2059, %v2066
          %v2083 = vadd.f32 %v2060, %v2066
          %2084 = vst [vmem:[%s308] sm:$0xff] %v2068
          %2085 = vst [vmem:[%s308 + $0x8] sm:$0xff] %v2069
          %2086 = vst [vmem:[%s308 + $0x10] sm:$0xff] %v2070
          %2087 = vst [vmem:[%s308 + $0x18] sm:$0xff] %v2071
          %2088 = vst [vmem:[%s308 + $0x20] sm:$0xff] %v2072
          %2089 = vst [vmem:[%s308 + $0x28] sm:$0xff] %v2073
          %2090 = vst [vmem:[%s308 + $0x30] sm:$0xff] %v2074
          %2091 = vst [vmem:[%s308 + $0x38] sm:$0xff] %v2075
          %2092 = vst [vmem:[%s308 + $0x40] sm:$0xff] %v2076
          %2093 = vst [vmem:[%s308 + $0x48] sm:$0xff] %v2077
          %2094 = vst [vmem:[%s308 + $0x50] sm:$0xff] %v2078
          %2095 = vst [vmem:[%s308 + $0x58] sm:$0xff] %v2079
          %2096 = vst [vmem:[%s308 + $0x60] sm:$0xff] %v2080
          %2097 = vst [vmem:[%s308 + $0x68] sm:$0xff] %v2081
          %2098 = vst [vmem:[%s308 + $0x70] sm:$0xff] %v2082
          %2099 = vst [vmem:[%s308 + $0x78] sm:$0xff] %v2083
        $region76: #{conv_block.1} parent=39 // pred_fallthru
          _
        %s2100 = sand.u32 %s156, 1
        %s2101 = scalar_lea.sflag [#allocation8], %s2100
        %s2102 = sand.u32 %s156, 1
        %s2103 = smul.addr %s2102, 128
        %s2104 = scalar_lea.vmem [#allocation15], %s2103
        // Predicated region
        $region77: #{conv_block.1} parent=39 // pred_check
          %p2105 = pneg %p166
        $region78: #{conv_block.1} parent=39 // pred_check_branch
          %2107 = sbr.rel (%p2105) target = $region80
        $region79: #{conv_block.1} parent=39 // pred_region
          %s2108 = smul.u32 %s28, %s29
          %s2109 = smul.u32 16, %s2108
          %s2111 = ssub.s32 2048, 2048
          %2112 = vsyncadd %s2101, %s2111
          %s2113 = smul.addr %s2109, 128
          %s2114 = scalar_lea.hbm %s5, %s2113
          %s2115 = sshll.u32 %s2104, 4
          %s2116 = int_to_ptr.vmem [resolvable:$true] %s2115
          %2121 = dma.vmem_to_hbm [thread:$0]  %s2116, 2048, %s2114, %s2101, 128, 128, 8
        $region80: #{conv_block.1} parent=39 // pred_fallthru
          _
      $region40: #{conv_block.1} parent=5 // pred_fallthru
        _
      %p2122 = scmp.le.s32.totalorder 2, %s19
      // Predicated region
      $region81: #{conv_block.1} parent=5 // pred_check
        %p2123 = pneg %p2122
      $region82: #{conv_block.1} parent=5 // pred_check_branch
        %2125 = sbr.rel (%p2123) target = $region84
      $region83: #{conv_block.1} parent=5 // pred_region
        %s2126 = ssub.s32 %s19, 2
        // Predicated region
        $region85: #{conv_block.1} parent=83 // pred_check
          %p2127 = pneg %p172
        $region86: #{conv_block.1} parent=83 // pred_check_branch
          %2129 = sbr.rel (%p2127) target = $region88
        $region87: #{conv_block.1} parent=83 // pred_region
          %s2130 = sand.u32 %s157, 1
          %s2131 = scalar_lea.sflag [#allocation8], %s2130
          %s2132 = sand.u32 %s157, 1
          %s2133 = smul.addr %s2132, 128
          %s2134 = scalar_lea.vmem [#allocation15], %s2133
          %2135 = dma.done %s2131, 2048
        $region88: #{conv_block.1} parent=83 // pred_fallthru
          _
      $region84: #{conv_block.1} parent=5 // pred_fallthru
        _
    $region6: #{conv_block.1} parent=1 // loop_footer
      %s23 = sadd.s32 1, %s19
    $region7: #{conv_block.1} parent=1 // loop_footer_branch
      %18 = sbr.rel target = $region3
    $region8: #{conv_block.1} parent=1 // loop_exit
      _
    %2136 = vsyncpa [#allocation7], 1
    %s2137 = scalar_lea.sflag [#allocation7], 1
    %2138 = vsyncpa %s2137, 1
    %2139 = vsyncpa [#allocation10], 1
    %2140 = vsyncpa [#allocation13], 1
    %2141 = vsyncpa [#allocation8], 1
    %s2142 = scalar_lea.sflag [#allocation8], 1
    %2143 = vsyncpa %s2142, 1

</llo_original>
